<compile_context>
chip_gen: v7x
topology: tpu7x:2x2x1
jax: 0.10.0
libtpu: 0.0.40
codegen_flags: <defaults>
</compile_context>

<pallas_src>
import jax
import jax.numpy as jnp
from jax import lax
from jax.experimental import pallas as pl
from jax.experimental.pallas import tpu as pltpu

HEADS = 3
EMB1 = 16          # embedding_size1
EMB2 = 8           # embedding_size2
LIN1 = 32          # linear_size1
LIN2 = 16          # linear_size2
BN_EPS = 1e-5
LRELU_SLOPE = 0.01  # F.leaky_relu default
GAT_SLOPE = 0.2     # GATConv attention leaky-relu slope


def _leaky(x, slope):
    return jnp.where(x > 0, x, slope * x)


def encoder_kernel(x_ref, adj_ref,
                   w1_ref, att_ref, htw_ref, htb_ref,
                   g1_ref, be1_ref,
                   w2_ref, b2_ref, g2_ref, be2_ref,
                   l1w_ref, l1b_ref, l2w_ref, l2b_ref,
                   tw_ref, tb_ref, packw_ref, packb_ref,
                   out_ref):
    x = x_ref[...]
    adj = adj_ref[...]            # [N, N], self loops included
    mask = adj > 0.0

    # ---- GATConv(in_channels, EMB1, heads=3), concat=True -------------------
    # All heads projected in one matmul; all per-node attention coefficients
    # (a_dst_h, a_src_h for each head) in one tiny MXU product.
    h = jnp.dot(x, w1_ref[...], preferred_element_type=jnp.float32)      # [N, 48]
    coef = jnp.dot(h, att_ref[...], preferred_element_type=jnp.float32)  # [N, 6]
    htw = htw_ref[...]                                                   # [48, 16]

    xt = None
    for hd in range(HEADS):
        hh = h[:, hd * EMB1:(hd + 1) * EMB1]            # [N, 16]
        a_dst = coef[:, 2 * hd:2 * hd + 1]              # [N, 1]
        a_src = coef[:, 2 * hd + 1:2 * hd + 2]          # [N, 1]
        e = a_dst + jnp.transpose(a_src)                # e[i, j] scores edge j -> i
        e = _leaky(e, GAT_SLOPE)
        e = jnp.where(mask, e, jnp.float32(-1e30))
        e = e - jnp.max(e, axis=1, keepdims=True)
        p = jnp.exp(e)                                  # masked entries underflow to 0
        inv = pl.reciprocal(jnp.sum(p, axis=1, keepdims=True), approx=True)
        attn = p * inv
        head_out = jnp.dot(attn, hh, preferred_element_type=jnp.float32)     # [N, 16]
        contrib = jnp.dot(head_out, htw[hd * EMB1:(hd + 1) * EMB1, :],
                          preferred_element_type=jnp.float32)                # [N, 16]
        xt = contrib if xt is None else xt + contrib
    # head_transform1 bias with the GAT bias folded in (htb_eff = b1 @ htw + htb)
    xt = xt + htb_ref[...]

    # ---- bn1: BatchNorm(EMB1), batch statistics ------------------------------
    mean1 = jnp.mean(xt, axis=0, keepdims=True)
    var1 = jnp.mean((xt - mean1) ** 2, axis=0, keepdims=True)
    xb1 = (xt - mean1) * lax.rsqrt(var1 + BN_EPS) * g1_ref[...] + be1_ref[...]

    # ---- GCNConv(EMB1, EMB2): D^-1/2 (A+I) D^-1/2 X W + b, normalization folded
    deg = jnp.sum(adj, axis=1, keepdims=True)           # self loops already counted
    dinv = lax.rsqrt(deg)
    h2 = jnp.dot(xb1, w2_ref[...], preferred_element_type=jnp.float32) * dinv
    xg2 = dinv * jnp.dot(adj, h2, preferred_element_type=jnp.float32) + b2_ref[...]

    # ---- bn2: BatchNorm(EMB2) -------------------------------------------------
    mean2 = jnp.mean(xg2, axis=0, keepdims=True)
    var2 = jnp.mean((xg2 - mean2) ** 2, axis=0, keepdims=True)
    xb2 = (xg2 - mean2) * lax.rsqrt(var2 + BN_EPS) * g2_ref[...] + be2_ref[...]

    # ---- MLP tail -------------------------------------------------------------
    x1 = _leaky(jnp.dot(xb2, l1w_ref[...], preferred_element_type=jnp.float32)
                + l1b_ref[...], LRELU_SLOPE)
    x2 = _leaky(jnp.dot(x1, l2w_ref[...], preferred_element_type=jnp.float32)
                + l2b_ref[...], LRELU_SLOPE)
    # reshape(B, n_atoms, LIN2) -> reshape(B, n_atoms*LIN2) is a no-op (n_atoms == 1)
    xtf = _leaky(jnp.dot(x2, tw_ref[...], preferred_element_type=jnp.float32)
                 + tb_ref[...], LRELU_SLOPE)

    # ---- mu / logstd packed into one matmul (reference applies logstd to mu) --
    out_ref[...] = (jnp.dot(xtf, packw_ref[...], preferred_element_type=jnp.float32)
                    + packb_ref[...])


def _fold_params(params):
    """Offline (glue-JAX) folds: attention-coefficient matrix, bias folds,
    packed mu/logstd head."""
    # Block-diagonal [48, 6]: columns (2h, 2h+1) hold (a_dst_h, a_src_h) in
    # rows h*16:(h+1)*16, so coef = h @ att gives all per-node coefficients.
    att = jnp.zeros((HEADS * EMB1, 2 * HEADS), jnp.float32)
    for hd in range(HEADS):
        att = att.at[hd * EMB1:(hd + 1) * EMB1, 2 * hd].set(params["adst"][hd])
        att = att.at[hd * EMB1:(hd + 1) * EMB1, 2 * hd + 1].set(params["asrc"][hd])
    htb_eff = params["b1"] @ params["htw"] + params["htb"]
    w_pack = jnp.concatenate(
        [params["muw"], params["muw"] @ params["lsw"]], axis=1)               # [out, 2*out]
    b_pack = jnp.concatenate(
        [params["mub"], params["mub"] @ params["lsw"] + params["lsb"]], axis=1)  # [1, 2*out]
    return att, htb_eff, w_pack, b_pack


def variational_gcn_encoder(x, edge_index, params):
    """Returns (mu, logstd, edge_index) exactly like the reference forward."""
    N = x.shape[0]
    out_channels = params["tw"].shape[1]

    # Dense adjacency with self loops (glue JAX, not the hot path).
    src, dst = edge_index[0], edge_index[1]
    adj = jnp.zeros((N, N), jnp.float32)
    adj = adj.at[dst, src].set(1.0)                       # message j -> i lives at adj[i, j]
    adj = adj.at[jnp.arange(N), jnp.arange(N)].set(1.0)   # self loops (GAT & GCN defaults)

    att, htb_eff, w_pack, b_pack = _fold_params(params)

    args = (x, adj,
            params["w1"], att, params["htw"], htb_eff,
            params["g1"], params["be1"],
            params["w2"], params["b2"], params["g2"], params["be2"],
            params["l1w"], params["l1b"], params["l2w"], params["l2b"],
            params["tw"], params["tb"], w_pack, b_pack)

    vmem = pl.BlockSpec(memory_space=pltpu.MemorySpace.VMEM)
    packed = pl.pallas_call(
        encoder_kernel,
        out_shape=jax.ShapeDtypeStruct((N, 2 * out_channels), jnp.float32),
        in_specs=[vmem] * len(args),
        out_specs=vmem,
    )(*args)

    mu = packed[:, :out_channels]
    ls = packed[:, out_channels:]
    return mu, ls, edge_index


def init_params(key, in_channels, out_channels, n_atoms):
    assert n_atoms == 1, "reference forward shapes are only consistent for n_atoms == 1"
    ks = jax.random.split(key, 10)

    def lin(k, fan_in, fan_out):
        kw, kb = jax.random.split(k)
        s = 1.0 / jnp.sqrt(jnp.float32(fan_in))
        w = jax.random.uniform(kw, (fan_in, fan_out), jnp.float32, -s, s)
        b = jax.random.uniform(kb, (1, fan_out), jnp.float32, -s, s)
        return w, b

    params = {}
    # GATConv
    params["w1"] = jax.random.normal(ks[0], (in_channels, HEADS * EMB1), jnp.float32) * 0.1
    params["asrc"] = jax.random.normal(ks[1], (HEADS, EMB1), jnp.float32) * 0.1
    params["adst"] = jax.random.normal(ks[2], (HEADS, EMB1), jnp.float32) * 0.1
    params["b1"] = jnp.zeros((1, HEADS * EMB1), jnp.float32)
    # head_transform1
    params["htw"], params["htb"] = lin(ks[3], HEADS * EMB1, EMB1)
    # bn1
    params["g1"] = jnp.ones((1, EMB1), jnp.float32)
    params["be1"] = jnp.zeros((1, EMB1), jnp.float32)
    # GCNConv
    params["w2"] = jax.random.normal(ks[4], (EMB1, EMB2), jnp.float32) * 0.1
    params["b2"] = jnp.zeros((1, EMB2), jnp.float32)
    # bn2
    params["g2"] = jnp.ones((1, EMB2), jnp.float32)
    params["be2"] = jnp.zeros((1, EMB2), jnp.float32)
    # linear1 / linear2
    params["l1w"], params["l1b"] = lin(ks[5], EMB2 * n_atoms, LIN1)
    params["l2w"], params["l2b"] = lin(ks[6], LIN1, LIN2)
    # transform / mu / logstd
    params["tw"], params["tb"] = lin(ks[7], LIN2, out_channels)
    params["muw"], params["mub"] = lin(ks[8], out_channels, out_channels)
    params["lsw"], params["lsb"] = lin(ks[9], out_channels, out_channels)
    return params


if __name__ == "__main__":
    key = jax.random.PRNGKey(0)
    kx, kp = jax.random.split(key)

    in_channels = 4
    out_channels = 8
    n_atoms = 1
    N = 8  # number of nodes (== batch_size = x.shape[0] in the reference forward)

    x = jax.random.normal(kx, (N, in_channels), jnp.float32)

    # bidirectional ring graph: [2, 2N] edge_index (COO, row0 = src, row1 = dst)
    src = jnp.arange(N, dtype=jnp.int32)
    dst = (src + 1) % N
    edge_index = jnp.stack([jnp.concatenate([src, dst]),
                            jnp.concatenate([dst, src])], axis=0)

    params = init_params(kp, in_channels, out_channels, n_atoms)

    mu, logstd, ei = variational_gcn_encoder(x, edge_index, params)
    jax.block_until_ready((mu, logstd))
    assert mu.shape == (N, out_channels) and logstd.shape == (N, out_channels)
    assert bool(jnp.all(jnp.isfinite(mu))) and bool(jnp.all(jnp.isfinite(logstd)))
    print("KERNEL_OK")
</pallas_src>

<mosaic_0001>
module attributes {stable_mosaic.version = 11 : i64} {
  func.func @encoder_kernel(%arg0: memref<8x4xf32, #tpu.memory_space<vmem>>, %arg1: memref<8x8xf32, #tpu.memory_space<vmem>>, %arg2: memref<4x48xf32, #tpu.memory_space<vmem>>, %arg3: memref<48x6xf32, #tpu.memory_space<vmem>>, %arg4: memref<48x16xf32, #tpu.memory_space<vmem>>, %arg5: memref<1x16xf32, #tpu.memory_space<vmem>>, %arg6: memref<1x16xf32, #tpu.memory_space<vmem>>, %arg7: memref<1x16xf32, #tpu.memory_space<vmem>>, %arg8: memref<16x8xf32, #tpu.memory_space<vmem>>, %arg9: memref<1x8xf32, #tpu.memory_space<vmem>>, %arg10: memref<1x8xf32, #tpu.memory_space<vmem>>, %arg11: memref<1x8xf32, #tpu.memory_space<vmem>>, %arg12: memref<8x32xf32, #tpu.memory_space<vmem>>, %arg13: memref<1x32xf32, #tpu.memory_space<vmem>>, %arg14: memref<32x16xf32, #tpu.memory_space<vmem>>, %arg15: memref<1x16xf32, #tpu.memory_space<vmem>>, %arg16: memref<16x8xf32, #tpu.memory_space<vmem>>, %arg17: memref<1x8xf32, #tpu.memory_space<vmem>>, %arg18: memref<8x16xf32, #tpu.memory_space<vmem>>, %arg19: memref<1x16xf32, #tpu.memory_space<vmem>>, %arg20: memref<8x16xf32, #tpu.memory_space<vmem>>) attributes {dimension_semantics = [], scalar_prefetch = 0 : i64, scratch_operands = 0 : i64, tpu.core_type = #tpu.core_type<tc>} {
    %c0 = arith.constant 0 : index
    %c0_0 = arith.constant 0 : index
    %0 = vector.load %arg0[%c0, %c0_0] : memref<8x4xf32, #tpu.memory_space<vmem>>, vector<8x4xf32>
    %c0_1 = arith.constant 0 : index
    %c0_2 = arith.constant 0 : index
    %1 = vector.load %arg1[%c0_1, %c0_2] : memref<8x8xf32, #tpu.memory_space<vmem>>, vector<8x8xf32>
    %cst = arith.constant 0.000000e+00 : f32
    %2 = vector.broadcast %cst : f32 to vector<8x8xf32>
    %3 = arith.cmpf ogt, %1, %2 : vector<8x8xf32>
    %c0_3 = arith.constant 0 : index
    %c0_4 = arith.constant 0 : index
    %4 = vector.load %arg2[%c0_3, %c0_4] : memref<4x48xf32, #tpu.memory_space<vmem>>, vector<4x48xf32>
    %cst_5 = arith.constant dense<0.000000e+00> : vector<8x48xf32>
    %5 = tpu.matmul %0, %4, %cst_5 {dimension_numbers = #tpu.dot_dimension_numbers<[1], [0], [0], [1], [0, 0, 1, 1], [], []>} : vector<8x4xf32>, vector<4x48xf32>, vector<8x48xf32> -> vector<8x48xf32>
    %c0_6 = arith.constant 0 : index
    %c0_7 = arith.constant 0 : index
    %6 = vector.load %arg3[%c0_6, %c0_7] : memref<48x6xf32, #tpu.memory_space<vmem>>, vector<48x6xf32>
    %cst_8 = arith.constant dense<0.000000e+00> : vector<8x6xf32>
    %7 = tpu.matmul %5, %6, %cst_8 {dimension_numbers = #tpu.dot_dimension_numbers<[1], [0], [0], [1], [0, 0, 1, 1], [], []>} : vector<8x48xf32>, vector<48x6xf32>, vector<8x6xf32> -> vector<8x6xf32>
    %c0_9 = arith.constant 0 : index
    %c0_10 = arith.constant 0 : index
    %8 = vector.load %arg4[%c0_9, %c0_10] : memref<48x16xf32, #tpu.memory_space<vmem>>, vector<48x16xf32>
    %9 = vector.extract_strided_slice %5 {offsets = [0, 0], sizes = [8, 16], strides = [1, 1]} : vector<8x48xf32> to vector<8x16xf32>
    %10 = vector.extract_strided_slice %7 {offsets = [0, 0], sizes = [8, 1], strides = [1, 1]} : vector<8x6xf32> to vector<8x1xf32>
    %11 = vector.extract_strided_slice %7 {offsets = [0, 1], sizes = [8, 1], strides = [1, 1]} : vector<8x6xf32> to vector<8x1xf32>
    %12 = tpu.transpose %11, [1, 0] : vector<8x1xf32> -> vector<1x8xf32>
    %13 = vector.broadcast %10 : vector<8x1xf32> to vector<8x8xf32>
    %14 = vector.broadcast %12 : vector<1x8xf32> to vector<8x8xf32>
    %15 = arith.addf %13, %14 : vector<8x8xf32>
    %cst_11 = arith.constant 0.000000e+00 : f32
    %16 = vector.broadcast %cst_11 : f32 to vector<8x8xf32>
    %17 = arith.cmpf ogt, %15, %16 : vector<8x8xf32>
    %cst_12 = arith.constant 2.000000e-01 : f32
    %18 = vector.broadcast %cst_12 : f32 to vector<8x8xf32>
    %19 = arith.mulf %18, %15 : vector<8x8xf32>
    %20 = arith.select %17, %15, %19 : vector<8x8xi1>, vector<8x8xf32>
    %cst_13 = arith.constant -1.000000e+30 : f32
    %21 = vector.broadcast %cst_13 : f32 to vector<8x8xf32>
    %22 = arith.select %3, %20, %21 : vector<8x8xi1>, vector<8x8xf32>
    %cst_14 = arith.constant dense<0xFF800000> : vector<8xf32>
    %23 = vector.multi_reduction <maximumf>, %22, %cst_14 [1] : vector<8x8xf32> to vector<8xf32>
    %24 = vector.shape_cast %23 : vector<8xf32> to vector<8x1xf32>
    %25 = vector.broadcast %24 : vector<8x1xf32> to vector<8x8xf32>
    %26 = arith.subf %22, %25 : vector<8x8xf32>
    %27 = math.exp %26 : vector<8x8xf32>
    %cst_15 = arith.constant dense<0.000000e+00> : vector<8xf32>
    %28 = vector.multi_reduction <add>, %27, %cst_15 [1] : vector<8x8xf32> to vector<8xf32>
    %29 = vector.shape_cast %28 : vector<8xf32> to vector<8x1xf32>
    %30 = tpu.reciprocal %29 {approx = true} : vector<8x1xf32> -> vector<8x1xf32>
    %31 = vector.broadcast %30 : vector<8x1xf32> to vector<8x8xf32>
    %32 = arith.mulf %27, %31 : vector<8x8xf32>
    %cst_16 = arith.constant dense<0.000000e+00> : vector<8x16xf32>
    %33 = tpu.matmul %32, %9, %cst_16 {dimension_numbers = #tpu.dot_dimension_numbers<[1], [0], [0], [1], [0, 0, 1, 1], [], []>} : vector<8x8xf32>, vector<8x16xf32>, vector<8x16xf32> -> vector<8x16xf32>
    %34 = vector.extract_strided_slice %8 {offsets = [0, 0], sizes = [16, 16], strides = [1, 1]} : vector<48x16xf32> to vector<16x16xf32>
    %cst_17 = arith.constant dense<0.000000e+00> : vector<8x16xf32>
    %35 = tpu.matmul %33, %34, %cst_17 {dimension_numbers = #tpu.dot_dimension_numbers<[1], [0], [0], [1], [0, 0, 1, 1], [], []>} : vector<8x16xf32>, vector<16x16xf32>, vector<8x16xf32> -> vector<8x16xf32>
    %36 = vector.extract_strided_slice %5 {offsets = [0, 16], sizes = [8, 16], strides = [1, 1]} : vector<8x48xf32> to vector<8x16xf32>
    %37 = vector.extract_strided_slice %7 {offsets = [0, 2], sizes = [8, 1], strides = [1, 1]} : vector<8x6xf32> to vector<8x1xf32>
    %38 = vector.extract_strided_slice %7 {offsets = [0, 3], sizes = [8, 1], strides = [1, 1]} : vector<8x6xf32> to vector<8x1xf32>
    %39 = tpu.transpose %38, [1, 0] : vector<8x1xf32> -> vector<1x8xf32>
    %40 = vector.broadcast %37 : vector<8x1xf32> to vector<8x8xf32>
    %41 = vector.broadcast %39 : vector<1x8xf32> to vector<8x8xf32>
    %42 = arith.addf %40, %41 : vector<8x8xf32>
    %cst_18 = arith.constant 0.000000e+00 : f32
    %43 = vector.broadcast %cst_18 : f32 to vector<8x8xf32>
    %44 = arith.cmpf ogt, %42, %43 : vector<8x8xf32>
    %cst_19 = arith.constant 2.000000e-01 : f32
    %45 = vector.broadcast %cst_19 : f32 to vector<8x8xf32>
    %46 = arith.mulf %45, %42 : vector<8x8xf32>
    %47 = arith.select %44, %42, %46 : vector<8x8xi1>, vector<8x8xf32>
    %cst_20 = arith.constant -1.000000e+30 : f32
    %48 = vector.broadcast %cst_20 : f32 to vector<8x8xf32>
    %49 = arith.select %3, %47, %48 : vector<8x8xi1>, vector<8x8xf32>
    %cst_21 = arith.constant dense<0xFF800000> : vector<8xf32>
    %50 = vector.multi_reduction <maximumf>, %49, %cst_21 [1] : vector<8x8xf32> to vector<8xf32>
    %51 = vector.shape_cast %50 : vector<8xf32> to vector<8x1xf32>
    %52 = vector.broadcast %51 : vector<8x1xf32> to vector<8x8xf32>
    %53 = arith.subf %49, %52 : vector<8x8xf32>
    %54 = math.exp %53 : vector<8x8xf32>
    %cst_22 = arith.constant dense<0.000000e+00> : vector<8xf32>
    %55 = vector.multi_reduction <add>, %54, %cst_22 [1] : vector<8x8xf32> to vector<8xf32>
    %56 = vector.shape_cast %55 : vector<8xf32> to vector<8x1xf32>
    %57 = tpu.reciprocal %56 {approx = true} : vector<8x1xf32> -> vector<8x1xf32>
    %58 = vector.broadcast %57 : vector<8x1xf32> to vector<8x8xf32>
    %59 = arith.mulf %54, %58 : vector<8x8xf32>
    %cst_23 = arith.constant dense<0.000000e+00> : vector<8x16xf32>
    %60 = tpu.matmul %59, %36, %cst_23 {dimension_numbers = #tpu.dot_dimension_numbers<[1], [0], [0], [1], [0, 0, 1, 1], [], []>} : vector<8x8xf32>, vector<8x16xf32>, vector<8x16xf32> -> vector<8x16xf32>
    %61 = vector.extract_strided_slice %8 {offsets = [16, 0], sizes = [16, 16], strides = [1, 1]} : vector<48x16xf32> to vector<16x16xf32>
    %cst_24 = arith.constant dense<0.000000e+00> : vector<8x16xf32>
    %62 = tpu.matmul %60, %61, %cst_24 {dimension_numbers = #tpu.dot_dimension_numbers<[1], [0], [0], [1], [0, 0, 1, 1], [], []>} : vector<8x16xf32>, vector<16x16xf32>, vector<8x16xf32> -> vector<8x16xf32>
    %63 = arith.addf %35, %62 : vector<8x16xf32>
    %64 = vector.extract_strided_slice %5 {offsets = [0, 32], sizes = [8, 16], strides = [1, 1]} : vector<8x48xf32> to vector<8x16xf32>
    %65 = vector.extract_strided_slice %7 {offsets = [0, 4], sizes = [8, 1], strides = [1, 1]} : vector<8x6xf32> to vector<8x1xf32>
    %66 = vector.extract_strided_slice %7 {offsets = [0, 5], sizes = [8, 1], strides = [1, 1]} : vector<8x6xf32> to vector<8x1xf32>
    %67 = tpu.transpose %66, [1, 0] : vector<8x1xf32> -> vector<1x8xf32>
    %68 = vector.broadcast %65 : vector<8x1xf32> to vector<8x8xf32>
    %69 = vector.broadcast %67 : vector<1x8xf32> to vector<8x8xf32>
    %70 = arith.addf %68, %69 : vector<8x8xf32>
    %cst_25 = arith.constant 0.000000e+00 : f32
    %71 = vector.broadcast %cst_25 : f32 to vector<8x8xf32>
    %72 = arith.cmpf ogt, %70, %71 : vector<8x8xf32>
    %cst_26 = arith.constant 2.000000e-01 : f32
    %73 = vector.broadcast %cst_26 : f32 to vector<8x8xf32>
    %74 = arith.mulf %73, %70 : vector<8x8xf32>
    %75 = arith.select %72, %70, %74 : vector<8x8xi1>, vector<8x8xf32>
    %cst_27 = arith.constant -1.000000e+30 : f32
    %76 = vector.broadcast %cst_27 : f32 to vector<8x8xf32>
    %77 = arith.select %3, %75, %76 : vector<8x8xi1>, vector<8x8xf32>
    %cst_28 = arith.constant dense<0xFF800000> : vector<8xf32>
    %78 = vector.multi_reduction <maximumf>, %77, %cst_28 [1] : vector<8x8xf32> to vector<8xf32>
    %79 = vector.shape_cast %78 : vector<8xf32> to vector<8x1xf32>
    %80 = vector.broadcast %79 : vector<8x1xf32> to vector<8x8xf32>
    %81 = arith.subf %77, %80 : vector<8x8xf32>
    %82 = math.exp %81 : vector<8x8xf32>
    %cst_29 = arith.constant dense<0.000000e+00> : vector<8xf32>
    %83 = vector.multi_reduction <add>, %82, %cst_29 [1] : vector<8x8xf32> to vector<8xf32>
    %84 = vector.shape_cast %83 : vector<8xf32> to vector<8x1xf32>
    %85 = tpu.reciprocal %84 {approx = true} : vector<8x1xf32> -> vector<8x1xf32>
    %86 = vector.broadcast %85 : vector<8x1xf32> to vector<8x8xf32>
    %87 = arith.mulf %82, %86 : vector<8x8xf32>
    %cst_30 = arith.constant dense<0.000000e+00> : vector<8x16xf32>
    %88 = tpu.matmul %87, %64, %cst_30 {dimension_numbers = #tpu.dot_dimension_numbers<[1], [0], [0], [1], [0, 0, 1, 1], [], []>} : vector<8x8xf32>, vector<8x16xf32>, vector<8x16xf32> -> vector<8x16xf32>
    %89 = vector.extract_strided_slice %8 {offsets = [32, 0], sizes = [16, 16], strides = [1, 1]} : vector<48x16xf32> to vector<16x16xf32>
    %cst_31 = arith.constant dense<0.000000e+00> : vector<8x16xf32>
    %90 = tpu.matmul %88, %89, %cst_31 {dimension_numbers = #tpu.dot_dimension_numbers<[1], [0], [0], [1], [0, 0, 1, 1], [], []>} : vector<8x16xf32>, vector<16x16xf32>, vector<8x16xf32> -> vector<8x16xf32>
    %91 = arith.addf %63, %90 : vector<8x16xf32>
    %c0_32 = arith.constant 0 : index
    %c0_33 = arith.constant 0 : index
    %92 = vector.load %arg5[%c0_32, %c0_33] : memref<1x16xf32, #tpu.memory_space<vmem>>, vector<1x16xf32>
    %93 = vector.broadcast %92 : vector<1x16xf32> to vector<8x16xf32>
    %94 = arith.addf %91, %93 : vector<8x16xf32>
    %cst_34 = arith.constant dense<0.000000e+00> : vector<16xf32>
    %95 = vector.multi_reduction <add>, %94, %cst_34 [0] : vector<8x16xf32> to vector<16xf32>
    %96 = vector.shape_cast %95 : vector<16xf32> to vector<1x16xf32>
    %cst_35 = arith.constant 8.000000e+00 : f32
    %97 = vector.broadcast %cst_35 : f32 to vector<1x16xf32>
    %98 = arith.divf %96, %97 : vector<1x16xf32>
    %99 = vector.broadcast %98 : vector<1x16xf32> to vector<8x16xf32>
    %100 = arith.subf %94, %99 : vector<8x16xf32>
    %101 = arith.mulf %100, %100 : vector<8x16xf32>
    %cst_36 = arith.constant dense<0.000000e+00> : vector<16xf32>
    %102 = vector.multi_reduction <add>, %101, %cst_36 [0] : vector<8x16xf32> to vector<16xf32>
    %103 = vector.shape_cast %102 : vector<16xf32> to vector<1x16xf32>
    %cst_37 = arith.constant 8.000000e+00 : f32
    %104 = vector.broadcast %cst_37 : f32 to vector<1x16xf32>
    %105 = arith.divf %103, %104 : vector<1x16xf32>
    %106 = vector.broadcast %98 : vector<1x16xf32> to vector<8x16xf32>
    %107 = arith.subf %94, %106 : vector<8x16xf32>
    %cst_38 = arith.constant 9.99999974E-6 : f32
    %108 = vector.broadcast %cst_38 : f32 to vector<1x16xf32>
    %109 = arith.addf %105, %108 : vector<1x16xf32>
    %110 = math.rsqrt %109 : vector<1x16xf32>
    %111 = vector.broadcast %110 : vector<1x16xf32> to vector<8x16xf32>
    %112 = arith.mulf %107, %111 : vector<8x16xf32>
    %c0_39 = arith.constant 0 : index
    %c0_40 = arith.constant 0 : index
    %113 = vector.load %arg6[%c0_39, %c0_40] : memref<1x16xf32, #tpu.memory_space<vmem>>, vector<1x16xf32>
    %114 = vector.broadcast %113 : vector<1x16xf32> to vector<8x16xf32>
    %115 = arith.mulf %112, %114 : vector<8x16xf32>
    %c0_41 = arith.constant 0 : index
    %c0_42 = arith.constant 0 : index
    %116 = vector.load %arg7[%c0_41, %c0_42] : memref<1x16xf32, #tpu.memory_space<vmem>>, vector<1x16xf32>
    %117 = vector.broadcast %116 : vector<1x16xf32> to vector<8x16xf32>
    %118 = arith.addf %115, %117 : vector<8x16xf32>
    %cst_43 = arith.constant dense<0.000000e+00> : vector<8xf32>
    %119 = vector.multi_reduction <add>, %1, %cst_43 [1] : vector<8x8xf32> to vector<8xf32>
    %120 = vector.shape_cast %119 : vector<8xf32> to vector<8x1xf32>
    %121 = math.rsqrt %120 : vector<8x1xf32>
    %c0_44 = arith.constant 0 : index
    %c0_45 = arith.constant 0 : index
    %122 = vector.load %arg8[%c0_44, %c0_45] : memref<16x8xf32, #tpu.memory_space<vmem>>, vector<16x8xf32>
    %cst_46 = arith.constant dense<0.000000e+00> : vector<8x8xf32>
    %123 = tpu.matmul %118, %122, %cst_46 {dimension_numbers = #tpu.dot_dimension_numbers<[1], [0], [0], [1], [0, 0, 1, 1], [], []>} : vector<8x16xf32>, vector<16x8xf32>, vector<8x8xf32> -> vector<8x8xf32>
    %124 = vector.broadcast %121 : vector<8x1xf32> to vector<8x8xf32>
    %125 = arith.mulf %123, %124 : vector<8x8xf32>
    %cst_47 = arith.constant dense<0.000000e+00> : vector<8x8xf32>
    %126 = tpu.matmul %1, %125, %cst_47 {dimension_numbers = #tpu.dot_dimension_numbers<[1], [0], [0], [1], [0, 0, 1, 1], [], []>} : vector<8x8xf32>, vector<8x8xf32>, vector<8x8xf32> -> vector<8x8xf32>
    %127 = vector.broadcast %121 : vector<8x1xf32> to vector<8x8xf32>
    %128 = arith.mulf %127, %126 : vector<8x8xf32>
    %c0_48 = arith.constant 0 : index
    %c0_49 = arith.constant 0 : index
    %129 = vector.load %arg9[%c0_48, %c0_49] : memref<1x8xf32, #tpu.memory_space<vmem>>, vector<1x8xf32>
    %130 = vector.broadcast %129 : vector<1x8xf32> to vector<8x8xf32>
    %131 = arith.addf %128, %130 : vector<8x8xf32>
    %cst_50 = arith.constant dense<0.000000e+00> : vector<8xf32>
    %132 = vector.multi_reduction <add>, %131, %cst_50 [0] : vector<8x8xf32> to vector<8xf32>
    %133 = vector.shape_cast %132 : vector<8xf32> to vector<1x8xf32>
    %cst_51 = arith.constant 8.000000e+00 : f32
    %134 = vector.broadcast %cst_51 : f32 to vector<1x8xf32>
    %135 = arith.divf %133, %134 : vector<1x8xf32>
    %136 = vector.broadcast %135 : vector<1x8xf32> to vector<8x8xf32>
    %137 = arith.subf %131, %136 : vector<8x8xf32>
    %138 = arith.mulf %137, %137 : vector<8x8xf32>
    %cst_52 = arith.constant dense<0.000000e+00> : vector<8xf32>
    %139 = vector.multi_reduction <add>, %138, %cst_52 [0] : vector<8x8xf32> to vector<8xf32>
    %140 = vector.shape_cast %139 : vector<8xf32> to vector<1x8xf32>
    %cst_53 = arith.constant 8.000000e+00 : f32
    %141 = vector.broadcast %cst_53 : f32 to vector<1x8xf32>
    %142 = arith.divf %140, %141 : vector<1x8xf32>
    %143 = vector.broadcast %135 : vector<1x8xf32> to vector<8x8xf32>
    %144 = arith.subf %131, %143 : vector<8x8xf32>
    %cst_54 = arith.constant 9.99999974E-6 : f32
    %145 = vector.broadcast %cst_54 : f32 to vector<1x8xf32>
    %146 = arith.addf %142, %145 : vector<1x8xf32>
    %147 = math.rsqrt %146 : vector<1x8xf32>
    %148 = vector.broadcast %147 : vector<1x8xf32> to vector<8x8xf32>
    %149 = arith.mulf %144, %148 : vector<8x8xf32>
    %c0_55 = arith.constant 0 : index
    %c0_56 = arith.constant 0 : index
    %150 = vector.load %arg10[%c0_55, %c0_56] : memref<1x8xf32, #tpu.memory_space<vmem>>, vector<1x8xf32>
    %151 = vector.broadcast %150 : vector<1x8xf32> to vector<8x8xf32>
    %152 = arith.mulf %149, %151 : vector<8x8xf32>
    %c0_57 = arith.constant 0 : index
    %c0_58 = arith.constant 0 : index
    %153 = vector.load %arg11[%c0_57, %c0_58] : memref<1x8xf32, #tpu.memory_space<vmem>>, vector<1x8xf32>
    %154 = vector.broadcast %153 : vector<1x8xf32> to vector<8x8xf32>
    %155 = arith.addf %152, %154 : vector<8x8xf32>
    %c0_59 = arith.constant 0 : index
    %c0_60 = arith.constant 0 : index
    %156 = vector.load %arg12[%c0_59, %c0_60] : memref<8x32xf32, #tpu.memory_space<vmem>>, vector<8x32xf32>
    %cst_61 = arith.constant dense<0.000000e+00> : vector<8x32xf32>
    %157 = tpu.matmul %155, %156, %cst_61 {dimension_numbers = #tpu.dot_dimension_numbers<[1], [0], [0], [1], [0, 0, 1, 1], [], []>} : vector<8x8xf32>, vector<8x32xf32>, vector<8x32xf32> -> vector<8x32xf32>
    %c0_62 = arith.constant 0 : index
    %c0_63 = arith.constant 0 : index
    %158 = vector.load %arg13[%c0_62, %c0_63] : memref<1x32xf32, #tpu.memory_space<vmem>>, vector<1x32xf32>
    %159 = vector.broadcast %158 : vector<1x32xf32> to vector<8x32xf32>
    %160 = arith.addf %157, %159 : vector<8x32xf32>
    %cst_64 = arith.constant 0.000000e+00 : f32
    %161 = vector.broadcast %cst_64 : f32 to vector<8x32xf32>
    %162 = arith.cmpf ogt, %160, %161 : vector<8x32xf32>
    %cst_65 = arith.constant 0.00999999977 : f32
    %163 = vector.broadcast %cst_65 : f32 to vector<8x32xf32>
    %164 = arith.mulf %163, %160 : vector<8x32xf32>
    %165 = arith.select %162, %160, %164 : vector<8x32xi1>, vector<8x32xf32>
    %c0_66 = arith.constant 0 : index
    %c0_67 = arith.constant 0 : index
    %166 = vector.load %arg14[%c0_66, %c0_67] : memref<32x16xf32, #tpu.memory_space<vmem>>, vector<32x16xf32>
    %cst_68 = arith.constant dense<0.000000e+00> : vector<8x16xf32>
    %167 = tpu.matmul %165, %166, %cst_68 {dimension_numbers = #tpu.dot_dimension_numbers<[1], [0], [0], [1], [0, 0, 1, 1], [], []>} : vector<8x32xf32>, vector<32x16xf32>, vector<8x16xf32> -> vector<8x16xf32>
    %c0_69 = arith.constant 0 : index
    %c0_70 = arith.constant 0 : index
    %168 = vector.load %arg15[%c0_69, %c0_70] : memref<1x16xf32, #tpu.memory_space<vmem>>, vector<1x16xf32>
    %169 = vector.broadcast %168 : vector<1x16xf32> to vector<8x16xf32>
    %170 = arith.addf %167, %169 : vector<8x16xf32>
    %cst_71 = arith.constant 0.000000e+00 : f32
    %171 = vector.broadcast %cst_71 : f32 to vector<8x16xf32>
    %172 = arith.cmpf ogt, %170, %171 : vector<8x16xf32>
    %cst_72 = arith.constant 0.00999999977 : f32
    %173 = vector.broadcast %cst_72 : f32 to vector<8x16xf32>
    %174 = arith.mulf %173, %170 : vector<8x16xf32>
    %175 = arith.select %172, %170, %174 : vector<8x16xi1>, vector<8x16xf32>
    %c0_73 = arith.constant 0 : index
    %c0_74 = arith.constant 0 : index
    %176 = vector.load %arg16[%c0_73, %c0_74] : memref<16x8xf32, #tpu.memory_space<vmem>>, vector<16x8xf32>
    %cst_75 = arith.constant dense<0.000000e+00> : vector<8x8xf32>
    %177 = tpu.matmul %175, %176, %cst_75 {dimension_numbers = #tpu.dot_dimension_numbers<[1], [0], [0], [1], [0, 0, 1, 1], [], []>} : vector<8x16xf32>, vector<16x8xf32>, vector<8x8xf32> -> vector<8x8xf32>
    %c0_76 = arith.constant 0 : index
    %c0_77 = arith.constant 0 : index
    %178 = vector.load %arg17[%c0_76, %c0_77] : memref<1x8xf32, #tpu.memory_space<vmem>>, vector<1x8xf32>
    %179 = vector.broadcast %178 : vector<1x8xf32> to vector<8x8xf32>
    %180 = arith.addf %177, %179 : vector<8x8xf32>
    %cst_78 = arith.constant 0.000000e+00 : f32
    %181 = vector.broadcast %cst_78 : f32 to vector<8x8xf32>
    %182 = arith.cmpf ogt, %180, %181 : vector<8x8xf32>
    %cst_79 = arith.constant 0.00999999977 : f32
    %183 = vector.broadcast %cst_79 : f32 to vector<8x8xf32>
    %184 = arith.mulf %183, %180 : vector<8x8xf32>
    %185 = arith.select %182, %180, %184 : vector<8x8xi1>, vector<8x8xf32>
    %c0_80 = arith.constant 0 : index
    %c0_81 = arith.constant 0 : index
    %186 = vector.load %arg18[%c0_80, %c0_81] : memref<8x16xf32, #tpu.memory_space<vmem>>, vector<8x16xf32>
    %cst_82 = arith.constant dense<0.000000e+00> : vector<8x16xf32>
    %187 = tpu.matmul %185, %186, %cst_82 {dimension_numbers = #tpu.dot_dimension_numbers<[1], [0], [0], [1], [0, 0, 1, 1], [], []>} : vector<8x8xf32>, vector<8x16xf32>, vector<8x16xf32> -> vector<8x16xf32>
    %c0_83 = arith.constant 0 : index
    %c0_84 = arith.constant 0 : index
    %188 = vector.load %arg19[%c0_83, %c0_84] : memref<1x16xf32, #tpu.memory_space<vmem>>, vector<1x16xf32>
    %189 = vector.broadcast %188 : vector<1x16xf32> to vector<8x16xf32>
    %190 = arith.addf %187, %189 : vector<8x16xf32>
    %c0_85 = arith.constant 0 : index
    %c0_86 = arith.constant 0 : index
    %191 = vector.load %arg20[%c0_85, %c0_86] : memref<8x16xf32, #tpu.memory_space<vmem>>, vector<8x16xf32>
    tpu.vector_store %arg20[%c0_85, %c0_86], %190 {strides = array<i32>} : memref<8x16xf32, #tpu.memory_space<vmem>>, vector<8x16xf32>,
    return
  }
}

</mosaic_0001>

<llo_original>
// kernel: tpu_custom_call.1
$region0: #{tpu_custom_call.1}
  #allocation0 [shape = 'u32[]', space=smem, size = 0x4, offset = 0x4, fixed_abs, tag = 'smem constant byte address 0x4 - core index']
  #allocation1 [shape = 'u32[144,128]{1,0:T(1,128)}', space=vmem, size = 0x12000, scoped, tag = 'internal scratch']
  %s0 = inlined_call_operand.vmem [shape: f32[8,4], index: 0, kind: input, shape index: {}]
  %s1 = inlined_call_operand.vmem [shape: f32[8,8], index: 1, kind: input, shape index: {}]
  %s2 = inlined_call_operand.vmem [shape: f32[4,48], index: 2, kind: input, shape index: {}]
  %s3 = inlined_call_operand.vmem [shape: f32[48,6], index: 3, kind: input, shape index: {}]
  %s4 = inlined_call_operand.vmem [shape: f32[48,16], index: 4, kind: input, shape index: {}]
  %s5 = inlined_call_operand.vmem [shape: f32[1,16], index: 5, kind: input, shape index: {}]
  %s6 = inlined_call_operand.vmem [shape: f32[1,16], index: 6, kind: input, shape index: {}]
  %s7 = inlined_call_operand.vmem [shape: f32[1,16], index: 7, kind: input, shape index: {}]
  %s8 = inlined_call_operand.vmem [shape: f32[16,8], index: 8, kind: input, shape index: {}]
  %s9 = inlined_call_operand.vmem [shape: f32[1,8], index: 9, kind: input, shape index: {}]
  %s10 = inlined_call_operand.vmem [shape: f32[1,8], index: 10, kind: input, shape index: {}]
  %s11 = inlined_call_operand.vmem [shape: f32[1,8], index: 11, kind: input, shape index: {}]
  %s12 = inlined_call_operand.vmem [shape: f32[8,32], index: 12, kind: input, shape index: {}]
  %s13 = inlined_call_operand.vmem [shape: f32[1,32], index: 13, kind: input, shape index: {}]
  %s14 = inlined_call_operand.vmem [shape: f32[32,16], index: 14, kind: input, shape index: {}]
  %s15 = inlined_call_operand.vmem [shape: f32[1,16], index: 15, kind: input, shape index: {}]
  %s16 = inlined_call_operand.vmem [shape: f32[16,8], index: 16, kind: input, shape index: {}]
  %s17 = inlined_call_operand.vmem [shape: f32[1,8], index: 17, kind: input, shape index: {}]
  %s18 = inlined_call_operand.vmem [shape: f32[8,16], index: 18, kind: input, shape index: {}]
  %s19 = inlined_call_operand.vmem [shape: f32[1,16], index: 19, kind: input, shape index: {}]
  %s20 = inlined_call_operand.hbm [shape: f32[8,16], index: 20, kind: output, shape index: {}]
  %s21 = sld [smem:[#allocation0]]
  $region90: #{tpu_custom_call.1} parent=0
    _
  %s23 = ssub.s32 1, %s21
  %s24 = scalar_select 0, %s23, %s21
  $region1: #{tpu_custom_call.1} parent=0
    #allocation2 [shape = 'u8[4096]{0}', space=vmem, size = 0x1000, scoped, tag = 'output window, operand 0, single buffered']
    #allocation3 [shape = 's32[1]{0}', space=sflag, size = 0x4, scoped, tag = 'scoped memory for tpu_custom_call.1']
    %25 = vsyncpa [#allocation3], 0
    // Predicated region
    $region2: #{tpu_custom_call.1} parent=1 // pred_check
      _
    $region3: #{tpu_custom_call.1} parent=1 // pred_check_branch
      %27 = sbr.rel (0) target = $region5
    $region4: #{tpu_custom_call.1} parent=1 // pred_region
      _
    $region5: #{tpu_custom_call.1} parent=1 // pred_fallthru
      _
    // Predicated region
    $region6: #{tpu_custom_call.1} parent=1 // pred_check
      _
    $region7: #{tpu_custom_call.1} parent=1 // pred_check_branch
      %29 = sbr.rel (0) target = $region9
    $region8: #{tpu_custom_call.1} parent=1 // pred_region
      _
    $region9: #{tpu_custom_call.1} parent=1 // pred_fallthru
      _
    // Predicated region
    $region10: #{tpu_custom_call.1} parent=1 // pred_check
      _
    $region11: #{tpu_custom_call.1} parent=1 // pred_check_branch
      %31 = sbr.rel (0) target = $region13
    $region12: #{tpu_custom_call.1} parent=1 // pred_region
      _
    $region13: #{tpu_custom_call.1} parent=1 // pred_fallthru
      _
    // Predicated region
    $region14: #{tpu_custom_call.1} parent=1 // pred_check
      _
    $region15: #{tpu_custom_call.1} parent=1 // pred_check_branch
      %33 = sbr.rel (0) target = $region17
    $region16: #{tpu_custom_call.1} parent=1 // pred_region
      _
    $region17: #{tpu_custom_call.1} parent=1 // pred_fallthru
      _
    // Predicated region
    $region18: #{tpu_custom_call.1} parent=1 // pred_check
      _
    $region19: #{tpu_custom_call.1} parent=1 // pred_check_branch
      %35 = sbr.rel (0) target = $region21
    $region20: #{tpu_custom_call.1} parent=1 // pred_region
      _
    $region21: #{tpu_custom_call.1} parent=1 // pred_fallthru
      _
    // Predicated region
    $region22: #{tpu_custom_call.1} parent=1 // pred_check
      _
    $region23: #{tpu_custom_call.1} parent=1 // pred_check_branch
      %37 = sbr.rel (0) target = $region25
    $region24: #{tpu_custom_call.1} parent=1 // pred_region
      _
    $region25: #{tpu_custom_call.1} parent=1 // pred_fallthru
      _
    // Predicated region
    $region26: #{tpu_custom_call.1} parent=1 // pred_check
      _
    $region27: #{tpu_custom_call.1} parent=1 // pred_check_branch
      %39 = sbr.rel (0) target = $region29
    $region28: #{tpu_custom_call.1} parent=1 // pred_region
      _
    $region29: #{tpu_custom_call.1} parent=1 // pred_fallthru
      _
    // Predicated region
    $region30: #{tpu_custom_call.1} parent=1 // pred_check
      _
    $region31: #{tpu_custom_call.1} parent=1 // pred_check_branch
      %41 = sbr.rel (0) target = $region33
    $region32: #{tpu_custom_call.1} parent=1 // pred_region
      _
    $region33: #{tpu_custom_call.1} parent=1 // pred_fallthru
      _
    // Predicated region
    $region34: #{tpu_custom_call.1} parent=1 // pred_check
      _
    $region35: #{tpu_custom_call.1} parent=1 // pred_check_branch
      %43 = sbr.rel (0) target = $region37
    $region36: #{tpu_custom_call.1} parent=1 // pred_region
      _
    $region37: #{tpu_custom_call.1} parent=1 // pred_fallthru
      _
    // Predicated region
    $region38: #{tpu_custom_call.1} parent=1 // pred_check
      _
    $region39: #{tpu_custom_call.1} parent=1 // pred_check_branch
      %45 = sbr.rel (0) target = $region41
    $region40: #{tpu_custom_call.1} parent=1 // pred_region
      _
    $region41: #{tpu_custom_call.1} parent=1 // pred_fallthru
      _
    // Predicated region
    $region42: #{tpu_custom_call.1} parent=1 // pred_check
      _
    $region43: #{tpu_custom_call.1} parent=1 // pred_check_branch
      %47 = sbr.rel (0) target = $region45
    $region44: #{tpu_custom_call.1} parent=1 // pred_region
      _
    $region45: #{tpu_custom_call.1} parent=1 // pred_fallthru
      _
    // Predicated region
    $region46: #{tpu_custom_call.1} parent=1 // pred_check
      _
    $region47: #{tpu_custom_call.1} parent=1 // pred_check_branch
      %49 = sbr.rel (0) target = $region49
    $region48: #{tpu_custom_call.1} parent=1 // pred_region
      _
    $region49: #{tpu_custom_call.1} parent=1 // pred_fallthru
      _
    // Predicated region
    $region50: #{tpu_custom_call.1} parent=1 // pred_check
      _
    $region51: #{tpu_custom_call.1} parent=1 // pred_check_branch
      %51 = sbr.rel (0) target = $region53
    $region52: #{tpu_custom_call.1} parent=1 // pred_region
      _
    $region53: #{tpu_custom_call.1} parent=1 // pred_fallthru
      _
    // Predicated region
    $region54: #{tpu_custom_call.1} parent=1 // pred_check
      _
    $region55: #{tpu_custom_call.1} parent=1 // pred_check_branch
      %53 = sbr.rel (0) target = $region57
    $region56: #{tpu_custom_call.1} parent=1 // pred_region
      _
    $region57: #{tpu_custom_call.1} parent=1 // pred_fallthru
      _
    // Predicated region
    $region58: #{tpu_custom_call.1} parent=1 // pred_check
      _
    $region59: #{tpu_custom_call.1} parent=1 // pred_check_branch
      %55 = sbr.rel (0) target = $region61
    $region60: #{tpu_custom_call.1} parent=1 // pred_region
      _
    $region61: #{tpu_custom_call.1} parent=1 // pred_fallthru
      _
    // Predicated region
    $region62: #{tpu_custom_call.1} parent=1 // pred_check
      _
    $region63: #{tpu_custom_call.1} parent=1 // pred_check_branch
      %57 = sbr.rel (0) target = $region65
    $region64: #{tpu_custom_call.1} parent=1 // pred_region
      _
    $region65: #{tpu_custom_call.1} parent=1 // pred_fallthru
      _
    // Predicated region
    $region66: #{tpu_custom_call.1} parent=1 // pred_check
      _
    $region67: #{tpu_custom_call.1} parent=1 // pred_check_branch
      %59 = sbr.rel (0) target = $region69
    $region68: #{tpu_custom_call.1} parent=1 // pred_region
      _
    $region69: #{tpu_custom_call.1} parent=1 // pred_fallthru
      _
    // Predicated region
    $region70: #{tpu_custom_call.1} parent=1 // pred_check
      _
    $region71: #{tpu_custom_call.1} parent=1 // pred_check_branch
      %61 = sbr.rel (0) target = $region73
    $region72: #{tpu_custom_call.1} parent=1 // pred_region
      _
    $region73: #{tpu_custom_call.1} parent=1 // pred_fallthru
      _
    // Predicated region
    $region74: #{tpu_custom_call.1} parent=1 // pred_check
      _
    $region75: #{tpu_custom_call.1} parent=1 // pred_check_branch
      %63 = sbr.rel (0) target = $region77
    $region76: #{tpu_custom_call.1} parent=1 // pred_region
      _
    $region77: #{tpu_custom_call.1} parent=1 // pred_fallthru
      _
    // Predicated region
    $region78: #{tpu_custom_call.1} parent=1 // pred_check
      _
    $region79: #{tpu_custom_call.1} parent=1 // pred_check_branch
      %65 = sbr.rel (0) target = $region81
    $region80: #{tpu_custom_call.1} parent=1 // pred_region
      _
    $region81: #{tpu_custom_call.1} parent=1 // pred_fallthru
      _
    %v66 = vld [vmem:[%s0] sm:$0xff]
    %v67 = vld [vmem:[%s1] sm:$0xff]
    %vm68 = vcmp.gt.f32.partialorder %v67, 0.0
    %v69 = vld [vmem:[%s2] sm:$0xf]
    %vm70 = vcmask 31744
    %v72 = vsel %vm70, %v66, 0
    %vm74 = vcmask 1043456
    %v76 = vsel %vm74, %v69, 0
    %78 = vmatprep.subr.mxu0 0.0
    %79 = vmatpush1.msra.mxu0 %v76
    %80 = vmatprep.subr.mxu0 0.0
    %81 = vmatpush1.msra.mxu0 0.0
    %82 = vmatprep.subr.mxu0 0.0
    %83 = vmatpush1.msra.mxu0 0.0
    %84 = vmatprep.subr.mxu0 0.0
    %85 = vmatpush1.msra.mxu0 0.0
    %86 = vmatprep.subr.mxu0 0.0
    %87 = vmatpush1.msra.mxu0 0.0
    %88 = vmatprep.subr.mxu0 0.0
    %89 = vmatpush1.msra.mxu0 0.0
    %90 = vmatprep.subr.mxu0 0.0
    %91 = vmatpush1.msra.mxu0 0.0
    %92 = vmatprep.subr.mxu0 0.0
    %93 = vmatpush1.msra.mxu0 0.0
    %94 = vmatprep.subr.mxu0 0.0
    %95 = vmatpush1.msra.mxu0 0.0
    %96 = vmatprep.subr.mxu0 0.0
    %97 = vmatpush1.msra.mxu0 0.0
    %98 = vmatprep.subr.mxu0 0.0
    %99 = vmatpush1.msra.mxu0 0.0
    %100 = vmatprep.subr.mxu0 0.0
    %101 = vmatpush1.msra.mxu0 0.0
    %102 = vmatprep.subr.mxu0 0.0
    %103 = vmatpush1.msra.mxu0 0.0
    %104 = vmatprep.subr.mxu0 0.0
    %105 = vmatpush1.msra.mxu0 0.0
    %106 = vmatprep.subr.mxu0 0.0
    %107 = vmatpush1.msra.mxu0 0.0
    %108 = vmatprep.subr.mxu0 0.0
    %109 = vmatpush1.msra.mxu0 0.0
    %110 = vmatprep.subr.mxu0 0.0
    %111 = vmatpush1.msra.mxu0 0.0
    %112 = vmatprep.subr.mxu0 0.0
    %113 = vmatpush1.msra.mxu0 0.0
    %114 = vmatprep.subr.mxu0 0.0
    %115 = vmatpush1.msra.mxu0 0.0
    %116 = vmatprep.subr.mxu0 0.0
    %117 = vmatpush1.msra.mxu0 0.0
    %118 = vmatprep.subr.mxu0 0.0
    %119 = vmatpush1.msra.mxu0 0.0
    %120 = vmatprep.subr.mxu0 0.0
    %121 = vmatpush1.msra.mxu0 0.0
    %122 = vmatprep.subr.mxu0 0.0
    %123 = vmatpush1.msra.mxu0 0.0
    %124 = vmatprep.subr.mxu0 0.0
    %125 = vmatpush1.msra.mxu0 0.0
    %126 = vmatprep.subr.mxu0 0.0
    %127 = vmatpush1.msra.mxu0 0.0
    %128 = vmatprep.subr.mxu0 0.0
    %129 = vmatpush1.msra.mxu0 0.0
    %130 = vmatprep.subr.mxu0 0.0
    %131 = vmatpush1.msra.mxu0 0.0
    %132 = vmatprep.subr.mxu0 0.0
    %133 = vmatpush1.msra.mxu0 0.0
    %134 = vmatprep.subr.mxu0 0.0
    %135 = vmatpush1.msra.mxu0 0.0
    %136 = vmatprep.subr.mxu0 0.0
    %137 = vmatpush1.msra.mxu0 0.0
    %138 = vmatprep.subr.mxu0 0.0
    %139 = vmatpush1.msra.mxu0 0.0
    %140 = vmatprep.subr.mxu0 0.0
    %141 = vmatpush1.msra.mxu0 0.0
    %142 = vmatprep.mubr.f32.mxu0 0.0
    %143 = vmatmul.mubr.f32.gmra.mrb[0].mxu0 %v72
    %v144 = vpop.f32.mrb[0].mxu0
    %v145 = vadd.f32 0.0, %v144
    %v146 = vpop.f32.mrb[0].mxu0
    %147 = vdwg.mxu0
    %v148 = vld [vmem:[%s3] sm:$0xff]
    %v149 = vld [vmem:[%s3 + $0x8] sm:$0xff]
    %v150 = vld [vmem:[%s3 + $0x10] sm:$0xff]
    %v151 = vld [vmem:[%s3 + $0x18] sm:$0xff]
    %v152 = vld [vmem:[%s3 + $0x20] sm:$0xff]
    %v153 = vld [vmem:[%s3 + $0x28] sm:$0xff]
    %vm154 = vcmask 392192
    %v156 = vsel %vm154, %v145, 0
    %158 = vmatprep.subr.mxu0 0.0
    %159 = vmatpush1.msra.mxu0 %v148
    %160 = vmatprep.subr.mxu0 0.0
    %161 = vmatpush1.msra.mxu0 %v149
    %162 = vmatprep.subr.mxu0 0.0
    %163 = vmatpush1.msra.mxu0 %v150
    %164 = vmatprep.subr.mxu0 0.0
    %165 = vmatpush1.msra.mxu0 %v151
    %166 = vmatprep.subr.mxu0 0.0
    %167 = vmatpush1.msra.mxu0 %v152
    %168 = vmatprep.subr.mxu0 0.0
    %169 = vmatpush1.msra.mxu0 %v153
    %170 = vmatprep.subr.mxu0 0.0
    %171 = vmatpush1.msra.mxu0 0.0
    %172 = vmatprep.subr.mxu0 0.0
    %173 = vmatpush1.msra.mxu0 0.0
    %174 = vmatprep.subr.mxu0 0.0
    %175 = vmatpush1.msra.mxu0 0.0
    %176 = vmatprep.subr.mxu0 0.0
    %177 = vmatpush1.msra.mxu0 0.0
    %178 = vmatprep.subr.mxu0 0.0
    %179 = vmatpush1.msra.mxu0 0.0
    %180 = vmatprep.subr.mxu0 0.0
    %181 = vmatpush1.msra.mxu0 0.0
    %182 = vmatprep.subr.mxu0 0.0
    %183 = vmatpush1.msra.mxu0 0.0
    %184 = vmatprep.subr.mxu0 0.0
    %185 = vmatpush1.msra.mxu0 0.0
    %186 = vmatprep.subr.mxu0 0.0
    %187 = vmatpush1.msra.mxu0 0.0
    %188 = vmatprep.subr.mxu0 0.0
    %189 = vmatpush1.msra.mxu0 0.0
    %190 = vmatprep.subr.mxu0 0.0
    %191 = vmatpush1.msra.mxu0 0.0
    %192 = vmatprep.subr.mxu0 0.0
    %193 = vmatpush1.msra.mxu0 0.0
    %194 = vmatprep.subr.mxu0 0.0
    %195 = vmatpush1.msra.mxu0 0.0
    %196 = vmatprep.subr.mxu0 0.0
    %197 = vmatpush1.msra.mxu0 0.0
    %198 = vmatprep.subr.mxu0 0.0
    %199 = vmatpush1.msra.mxu0 0.0
    %200 = vmatprep.subr.mxu0 0.0
    %201 = vmatpush1.msra.mxu0 0.0
    %202 = vmatprep.subr.mxu0 0.0
    %203 = vmatpush1.msra.mxu0 0.0
    %204 = vmatprep.subr.mxu0 0.0
    %205 = vmatpush1.msra.mxu0 0.0
    %206 = vmatprep.subr.mxu0 0.0
    %207 = vmatpush1.msra.mxu0 0.0
    %208 = vmatprep.subr.mxu0 0.0
    %209 = vmatpush1.msra.mxu0 0.0
    %210 = vmatprep.subr.mxu0 0.0
    %211 = vmatpush1.msra.mxu0 0.0
    %212 = vmatprep.subr.mxu0 0.0
    %213 = vmatpush1.msra.mxu0 0.0
    %214 = vmatprep.subr.mxu0 0.0
    %215 = vmatpush1.msra.mxu0 0.0
    %216 = vmatprep.subr.mxu0 0.0
    %217 = vmatpush1.msra.mxu0 0.0
    %218 = vmatprep.subr.mxu0 0.0
    %219 = vmatpush1.msra.mxu0 0.0
    %220 = vmatprep.subr.mxu0 0.0
    %221 = vmatpush1.msra.mxu0 0.0
    %222 = vmatprep.mubr.f32.mxu0 0.0
    %223 = vmatmul.mubr.f32.gmra.mrb[0].mxu0 %v156
    %v224 = vpop.f32.mrb[0].mxu0
    %v225 = vadd.f32 0.0, %v224
    %v226 = vpop.f32.mrb[0].mxu0
    %227 = vdwg.mxu0
    %v228 = vld [vmem:[%s4] sm:$0xff]
    %v229 = vld [vmem:[%s4 + $0x8] sm:$0xff]
    %v230 = vld [vmem:[%s4 + $0x10] sm:$0xff]
    %v231 = vld [vmem:[%s4 + $0x18] sm:$0xff]
    %v232 = vld [vmem:[%s4 + $0x20] sm:$0xff]
    %v233 = vld [vmem:[%s4 + $0x28] sm:$0xff]
    %235 = vrot.lane.b32.xlu0 %v225, 127
    %v236 = vpop.permute.xlu0 %235
    %238 = vxpose.xlu0.b32.start [1/16] %v236, 128
    %239 = vxpose.xlu0.b32.cont [2/16] 0.0, 128
    %240 = vxpose.xlu0.b32.cont [3/16] 0.0, 128
    %241 = vxpose.xlu0.b32.cont [4/16] 0.0, 128
    %242 = vxpose.xlu0.b32.cont [5/16] 0.0, 128
    %243 = vxpose.xlu0.b32.cont [6/16] 0.0, 128
    %244 = vxpose.xlu0.b32.cont [7/16] 0.0, 128
    %245 = vxpose.xlu0.b32.cont [8/16] 0.0, 128
    %246 = vxpose.xlu0.b32.cont [9/16] 0.0, 128
    %247 = vxpose.xlu0.b32.cont [10/16] 0.0, 128
    %248 = vxpose.xlu0.b32.cont [11/16] 0.0, 128
    %249 = vxpose.xlu0.b32.cont [12/16] 0.0, 128
    %250 = vxpose.xlu0.b32.cont [13/16] 0.0, 128
    %251 = vxpose.xlu0.b32.cont [14/16] 0.0, 128
    %252 = vxpose.xlu0.b32.cont [15/16] 0.0, 128
    %253 = vxpose.xlu0.b32.end [16/16] 0.0, 128
    %v254 = vpop.trf.xlu0
    %v255 = vpop.trf.xlu0
    %v256 = vpop.trf.xlu0
    %v257 = vpop.trf.xlu0
    %v258 = vpop.trf.xlu0
    %v259 = vpop.trf.xlu0
    %v260 = vpop.trf.xlu0
    %v261 = vpop.trf.xlu0
    %v262 = vpop.trf.xlu0
    %v263 = vpop.trf.xlu0
    %v264 = vpop.trf.xlu0
    %v265 = vpop.trf.xlu0
    %v266 = vpop.trf.xlu0
    %v267 = vpop.trf.xlu0
    %v268 = vpop.trf.xlu0
    %v269 = vpop.trf.xlu0
    %270 = vset.pattern.permute.xlu0 0
    %271 = vperm.xlu0 %270, %v225
    %v272 = vpop.permute.xlu0 %271
    %v274 = vlaneseq
    %v275 = vshrl.u32 %v274, 7
    %v276 = vsub.s32 0, %v275
    %v277 = vrot.slane %v254, %v276
    %v278 = vadd.f32 %v272, %v277
    %vm279 = vcmp.gt.f32.partialorder %v278, 0.0
    %v280 = vmul.f32 %v278, 0.2
    %v281 = vsel %vm279, %v278, %v280
    %v282 = vsel %vm68, %v281, -1e+30
    %vm283 = vcmask 64512
    %v284 = vsel %vm283, %v282, -inf
    %285 = vmax.xlane.f32.xlu0 %v284
    %v286 = vpop.xlane.xlu0 %285
    %v287 = vsub.f32 %v282, %v286
    %v288 = vmul.f32 %v287, 1.442695
    %v289 = vpow.pop %v288
    %v290 = vsel %vm283, %v289, 0.0
    %291 = vadd.xlane.f32.xlu0 %v290
    %v292 = vpop.xlane.xlu0 %291
    %v293 = vrcp.pop %v292
    %v294 = vmul.f32 %v289, %v293
    %v296 = vsel %vm283, %v294, 0
    %298 = vmatprep.subr.mxu0 0.0
    %299 = vmatpush1.msra.mxu0 %v145
    %300 = vmatprep.subr.mxu0 0.0
    %301 = vmatpush1.msra.mxu0 0.0
    %302 = vmatprep.subr.mxu0 0.0
    %303 = vmatpush1.msra.mxu0 0.0
    %304 = vmatprep.subr.mxu0 0.0
    %305 = vmatpush1.msra.mxu0 0.0
    %306 = vmatprep.subr.mxu0 0.0
    %307 = vmatpush1.msra.mxu0 0.0
    %308 = vmatprep.subr.mxu0 0.0
    %309 = vmatpush1.msra.mxu0 0.0
    %310 = vmatprep.subr.mxu0 0.0
    %311 = vmatpush1.msra.mxu0 0.0
    %312 = vmatprep.subr.mxu0 0.0
    %313 = vmatpush1.msra.mxu0 0.0
    %314 = vmatprep.subr.mxu0 0.0
    %315 = vmatpush1.msra.mxu0 0.0
    %316 = vmatprep.subr.mxu0 0.0
    %317 = vmatpush1.msra.mxu0 0.0
    %318 = vmatprep.subr.mxu0 0.0
    %319 = vmatpush1.msra.mxu0 0.0
    %320 = vmatprep.subr.mxu0 0.0
    %321 = vmatpush1.msra.mxu0 0.0
    %322 = vmatprep.subr.mxu0 0.0
    %323 = vmatpush1.msra.mxu0 0.0
    %324 = vmatprep.subr.mxu0 0.0
    %325 = vmatpush1.msra.mxu0 0.0
    %326 = vmatprep.subr.mxu0 0.0
    %327 = vmatpush1.msra.mxu0 0.0
    %328 = vmatprep.subr.mxu0 0.0
    %329 = vmatpush1.msra.mxu0 0.0
    %330 = vmatprep.subr.mxu0 0.0
    %331 = vmatpush1.msra.mxu0 0.0
    %332 = vmatprep.subr.mxu0 0.0
    %333 = vmatpush1.msra.mxu0 0.0
    %334 = vmatprep.subr.mxu0 0.0
    %335 = vmatpush1.msra.mxu0 0.0
    %336 = vmatprep.subr.mxu0 0.0
    %337 = vmatpush1.msra.mxu0 0.0
    %338 = vmatprep.subr.mxu0 0.0
    %339 = vmatpush1.msra.mxu0 0.0
    %340 = vmatprep.subr.mxu0 0.0
    %341 = vmatpush1.msra.mxu0 0.0
    %342 = vmatprep.subr.mxu0 0.0
    %343 = vmatpush1.msra.mxu0 0.0
    %344 = vmatprep.subr.mxu0 0.0
    %345 = vmatpush1.msra.mxu0 0.0
    %346 = vmatprep.subr.mxu0 0.0
    %347 = vmatpush1.msra.mxu0 0.0
    %348 = vmatprep.subr.mxu0 0.0
    %349 = vmatpush1.msra.mxu0 0.0
    %350 = vmatprep.subr.mxu0 0.0
    %351 = vmatpush1.msra.mxu0 0.0
    %352 = vmatprep.subr.mxu0 0.0
    %353 = vmatpush1.msra.mxu0 0.0
    %354 = vmatprep.subr.mxu0 0.0
    %355 = vmatpush1.msra.mxu0 0.0
    %356 = vmatprep.subr.mxu0 0.0
    %357 = vmatpush1.msra.mxu0 0.0
    %358 = vmatprep.subr.mxu0 0.0
    %359 = vmatpush1.msra.mxu0 0.0
    %360 = vmatprep.subr.mxu0 0.0
    %361 = vmatpush1.msra.mxu0 0.0
    %362 = vmatprep.mubr.f32.mxu0 0.0
    %363 = vmatmul.mubr.f32.gmra.mrb[0].mxu0 %v296
    %v364 = vpop.f32.mrb[0].mxu0
    %v365 = vadd.f32 0.0, %v364
    %v366 = vpop.f32.mrb[0].mxu0
    %367 = vdwg.mxu0
    %368 = vrot.lane.b32.xlu0 %v225, 125
    %v369 = vpop.permute.xlu0 %368
    %371 = vxpose.xlu0.b32.start [1/16] %v369, 128
    %372 = vxpose.xlu0.b32.cont [2/16] 0.0, 128
    %373 = vxpose.xlu0.b32.cont [3/16] 0.0, 128
    %374 = vxpose.xlu0.b32.cont [4/16] 0.0, 128
    %375 = vxpose.xlu0.b32.cont [5/16] 0.0, 128
    %376 = vxpose.xlu0.b32.cont [6/16] 0.0, 128
    %377 = vxpose.xlu0.b32.cont [7/16] 0.0, 128
    %378 = vxpose.xlu0.b32.cont [8/16] 0.0, 128
    %379 = vxpose.xlu0.b32.cont [9/16] 0.0, 128
    %380 = vxpose.xlu0.b32.cont [10/16] 0.0, 128
    %381 = vxpose.xlu0.b32.cont [11/16] 0.0, 128
    %382 = vxpose.xlu0.b32.cont [12/16] 0.0, 128
    %383 = vxpose.xlu0.b32.cont [13/16] 0.0, 128
    %384 = vxpose.xlu0.b32.cont [14/16] 0.0, 128
    %385 = vxpose.xlu0.b32.cont [15/16] 0.0, 128
    %386 = vxpose.xlu0.b32.end [16/16] 0.0, 128
    %v387 = vpop.trf.xlu0
    %v388 = vpop.trf.xlu0
    %v389 = vpop.trf.xlu0
    %v390 = vpop.trf.xlu0
    %v391 = vpop.trf.xlu0
    %v392 = vpop.trf.xlu0
    %v393 = vpop.trf.xlu0
    %v394 = vpop.trf.xlu0
    %v395 = vpop.trf.xlu0
    %v396 = vpop.trf.xlu0
    %v397 = vpop.trf.xlu0
    %v398 = vpop.trf.xlu0
    %v399 = vpop.trf.xlu0
    %v400 = vpop.trf.xlu0
    %v401 = vpop.trf.xlu0
    %v402 = vpop.trf.xlu0
    %403 = vset.pattern.permute.xlu0 2
    %404 = vperm.xlu0 %403, %v225
    %v405 = vpop.permute.xlu0 %404
    %v407 = vlaneseq
    %v408 = vshrl.u32 %v407, 7
    %v409 = vsub.s32 0, %v408
    %v410 = vrot.slane %v387, %v409
    %v411 = vadd.f32 %v405, %v410
    %vm412 = vcmp.gt.f32.partialorder %v411, 0.0
    %v413 = vmul.f32 %v411, 0.2
    %v414 = vsel %vm412, %v411, %v413
    %v415 = vsel %vm68, %v414, -1e+30
    %v416 = vsel %vm283, %v415, -inf
    %417 = vmax.xlane.f32.xlu0 %v416
    %v418 = vpop.xlane.xlu0 %417
    %v419 = vsub.f32 %v415, %v418
    %v420 = vmul.f32 %v419, 1.442695
    %v421 = vpow.pop %v420
    %v422 = vsel %vm283, %v421, 0.0
    %423 = vadd.xlane.f32.xlu0 %v422
    %v424 = vpop.xlane.xlu0 %423
    %v425 = vrcp.pop %v424
    %v426 = vmul.f32 %v421, %v425
    %427 = vrot.lane.b32.xlu0 %v145, 112
    %v428 = vpop.permute.xlu0 %427
    %v431 = vsel %vm283, %v426, 0
    %433 = vmatprep.subr.mxu0 0.0
    %434 = vmatpush1.msra.mxu0 %v428
    %435 = vmatprep.subr.mxu0 0.0
    %436 = vmatpush1.msra.mxu0 0.0
    %437 = vmatprep.subr.mxu0 0.0
    %438 = vmatpush1.msra.mxu0 0.0
    %439 = vmatprep.subr.mxu0 0.0
    %440 = vmatpush1.msra.mxu0 0.0
    %441 = vmatprep.subr.mxu0 0.0
    %442 = vmatpush1.msra.mxu0 0.0
    %443 = vmatprep.subr.mxu0 0.0
    %444 = vmatpush1.msra.mxu0 0.0
    %445 = vmatprep.subr.mxu0 0.0
    %446 = vmatpush1.msra.mxu0 0.0
    %447 = vmatprep.subr.mxu0 0.0
    %448 = vmatpush1.msra.mxu0 0.0
    %449 = vmatprep.subr.mxu0 0.0
    %450 = vmatpush1.msra.mxu0 0.0
    %451 = vmatprep.subr.mxu0 0.0
    %452 = vmatpush1.msra.mxu0 0.0
    %453 = vmatprep.subr.mxu0 0.0
    %454 = vmatpush1.msra.mxu0 0.0
    %455 = vmatprep.subr.mxu0 0.0
    %456 = vmatpush1.msra.mxu0 0.0
    %457 = vmatprep.subr.mxu0 0.0
    %458 = vmatpush1.msra.mxu0 0.0
    %459 = vmatprep.subr.mxu0 0.0
    %460 = vmatpush1.msra.mxu0 0.0
    %461 = vmatprep.subr.mxu0 0.0
    %462 = vmatpush1.msra.mxu0 0.0
    %463 = vmatprep.subr.mxu0 0.0
    %464 = vmatpush1.msra.mxu0 0.0
    %465 = vmatprep.subr.mxu0 0.0
    %466 = vmatpush1.msra.mxu0 0.0
    %467 = vmatprep.subr.mxu0 0.0
    %468 = vmatpush1.msra.mxu0 0.0
    %469 = vmatprep.subr.mxu0 0.0
    %470 = vmatpush1.msra.mxu0 0.0
    %471 = vmatprep.subr.mxu0 0.0
    %472 = vmatpush1.msra.mxu0 0.0
    %473 = vmatprep.subr.mxu0 0.0
    %474 = vmatpush1.msra.mxu0 0.0
    %475 = vmatprep.subr.mxu0 0.0
    %476 = vmatpush1.msra.mxu0 0.0
    %477 = vmatprep.subr.mxu0 0.0
    %478 = vmatpush1.msra.mxu0 0.0
    %479 = vmatprep.subr.mxu0 0.0
    %480 = vmatpush1.msra.mxu0 0.0
    %481 = vmatprep.subr.mxu0 0.0
    %482 = vmatpush1.msra.mxu0 0.0
    %483 = vmatprep.subr.mxu0 0.0
    %484 = vmatpush1.msra.mxu0 0.0
    %485 = vmatprep.subr.mxu0 0.0
    %486 = vmatpush1.msra.mxu0 0.0
    %487 = vmatprep.subr.mxu0 0.0
    %488 = vmatpush1.msra.mxu0 0.0
    %489 = vmatprep.subr.mxu0 0.0
    %490 = vmatpush1.msra.mxu0 0.0
    %491 = vmatprep.subr.mxu0 0.0
    %492 = vmatpush1.msra.mxu0 0.0
    %493 = vmatprep.subr.mxu0 0.0
    %494 = vmatpush1.msra.mxu0 0.0
    %495 = vmatprep.subr.mxu0 0.0
    %496 = vmatpush1.msra.mxu0 0.0
    %497 = vmatprep.mubr.f32.mxu0 0.0
    %498 = vmatmul.mubr.f32.gmra.mrb[0].mxu0 %v431
    %v499 = vpop.f32.mrb[0].mxu0
    %v500 = vadd.f32 0.0, %v499
    %v501 = vpop.f32.mrb[0].mxu0
    %502 = vdwg.mxu0
    %vm503 = vcmask 130048
    %v505 = vsel %vm503, %v500, 0
    %507 = vmatprep.subr.mxu0 0.0
    %508 = vmatpush1.msra.mxu0 %v230
    %509 = vmatprep.subr.mxu0 0.0
    %510 = vmatpush1.msra.mxu0 %v231
    %511 = vmatprep.subr.mxu0 0.0
    %512 = vmatpush1.msra.mxu0 0.0
    %513 = vmatprep.subr.mxu0 0.0
    %514 = vmatpush1.msra.mxu0 0.0
    %515 = vmatprep.subr.mxu0 0.0
    %516 = vmatpush1.msra.mxu0 0.0
    %517 = vmatprep.subr.mxu0 0.0
    %518 = vmatpush1.msra.mxu0 0.0
    %519 = vmatprep.subr.mxu0 0.0
    %520 = vmatpush1.msra.mxu0 0.0
    %521 = vmatprep.subr.mxu0 0.0
    %522 = vmatpush1.msra.mxu0 0.0
    %523 = vmatprep.subr.mxu0 0.0
    %524 = vmatpush1.msra.mxu0 0.0
    %525 = vmatprep.subr.mxu0 0.0
    %526 = vmatpush1.msra.mxu0 0.0
    %527 = vmatprep.subr.mxu0 0.0
    %528 = vmatpush1.msra.mxu0 0.0
    %529 = vmatprep.subr.mxu0 0.0
    %530 = vmatpush1.msra.mxu0 0.0
    %531 = vmatprep.subr.mxu0 0.0
    %532 = vmatpush1.msra.mxu0 0.0
    %533 = vmatprep.subr.mxu0 0.0
    %534 = vmatpush1.msra.mxu0 0.0
    %535 = vmatprep.subr.mxu0 0.0
    %536 = vmatpush1.msra.mxu0 0.0
    %537 = vmatprep.subr.mxu0 0.0
    %538 = vmatpush1.msra.mxu0 0.0
    %539 = vmatprep.subr.mxu0 0.0
    %540 = vmatpush1.msra.mxu0 0.0
    %541 = vmatprep.subr.mxu0 0.0
    %542 = vmatpush1.msra.mxu0 0.0
    %543 = vmatprep.subr.mxu0 0.0
    %544 = vmatpush1.msra.mxu0 0.0
    %545 = vmatprep.subr.mxu0 0.0
    %546 = vmatpush1.msra.mxu0 0.0
    %547 = vmatprep.subr.mxu0 0.0
    %548 = vmatpush1.msra.mxu0 0.0
    %549 = vmatprep.subr.mxu0 0.0
    %550 = vmatpush1.msra.mxu0 0.0
    %551 = vmatprep.subr.mxu0 0.0
    %552 = vmatpush1.msra.mxu0 0.0
    %553 = vmatprep.subr.mxu0 0.0
    %554 = vmatpush1.msra.mxu0 0.0
    %555 = vmatprep.subr.mxu0 0.0
    %556 = vmatpush1.msra.mxu0 0.0
    %557 = vmatprep.subr.mxu0 0.0
    %558 = vmatpush1.msra.mxu0 0.0
    %559 = vmatprep.subr.mxu0 0.0
    %560 = vmatpush1.msra.mxu0 0.0
    %561 = vmatprep.subr.mxu0 0.0
    %562 = vmatpush1.msra.mxu0 0.0
    %563 = vmatprep.subr.mxu0 0.0
    %564 = vmatpush1.msra.mxu0 0.0
    %565 = vmatprep.subr.mxu0 0.0
    %566 = vmatpush1.msra.mxu0 0.0
    %567 = vmatprep.subr.mxu0 0.0
    %568 = vmatpush1.msra.mxu0 0.0
    %569 = vmatprep.subr.mxu0 0.0
    %570 = vmatpush1.msra.mxu0 0.0
    %571 = vmatprep.mubr.f32.mxu0 0.0
    %572 = vmatmul.mubr.f32.gmra.mrb[0].mxu0 %v505
    %v573 = vpop.f32.mrb[0].mxu0
    %v574 = vadd.f32 0.0, %v573
    %v575 = vpop.f32.mrb[0].mxu0
    %576 = vdwg.mxu0
    %v578 = vsel %vm503, %v365, 0
    %580 = vmatprep.subr.mxu0 0.0
    %581 = vmatpush1.msra.mxu0 %v228
    %582 = vmatprep.subr.mxu0 0.0
    %583 = vmatpush1.msra.mxu0 %v229
    %584 = vmatprep.subr.mxu0 0.0
    %585 = vmatpush1.msra.mxu0 0.0
    %586 = vmatprep.subr.mxu0 0.0
    %587 = vmatpush1.msra.mxu0 0.0
    %588 = vmatprep.subr.mxu0 0.0
    %589 = vmatpush1.msra.mxu0 0.0
    %590 = vmatprep.subr.mxu0 0.0
    %591 = vmatpush1.msra.mxu0 0.0
    %592 = vmatprep.subr.mxu0 0.0
    %593 = vmatpush1.msra.mxu0 0.0
    %594 = vmatprep.subr.mxu0 0.0
    %595 = vmatpush1.msra.mxu0 0.0
    %596 = vmatprep.subr.mxu0 0.0
    %597 = vmatpush1.msra.mxu0 0.0
    %598 = vmatprep.subr.mxu0 0.0
    %599 = vmatpush1.msra.mxu0 0.0
    %600 = vmatprep.subr.mxu0 0.0
    %601 = vmatpush1.msra.mxu0 0.0
    %602 = vmatprep.subr.mxu0 0.0
    %603 = vmatpush1.msra.mxu0 0.0
    %604 = vmatprep.subr.mxu0 0.0
    %605 = vmatpush1.msra.mxu0 0.0
    %606 = vmatprep.subr.mxu0 0.0
    %607 = vmatpush1.msra.mxu0 0.0
    %608 = vmatprep.subr.mxu0 0.0
    %609 = vmatpush1.msra.mxu0 0.0
    %610 = vmatprep.subr.mxu0 0.0
    %611 = vmatpush1.msra.mxu0 0.0
    %612 = vmatprep.subr.mxu0 0.0
    %613 = vmatpush1.msra.mxu0 0.0
    %614 = vmatprep.subr.mxu0 0.0
    %615 = vmatpush1.msra.mxu0 0.0
    %616 = vmatprep.subr.mxu0 0.0
    %617 = vmatpush1.msra.mxu0 0.0
    %618 = vmatprep.subr.mxu0 0.0
    %619 = vmatpush1.msra.mxu0 0.0
    %620 = vmatprep.subr.mxu0 0.0
    %621 = vmatpush1.msra.mxu0 0.0
    %622 = vmatprep.subr.mxu0 0.0
    %623 = vmatpush1.msra.mxu0 0.0
    %624 = vmatprep.subr.mxu0 0.0
    %625 = vmatpush1.msra.mxu0 0.0
    %626 = vmatprep.subr.mxu0 0.0
    %627 = vmatpush1.msra.mxu0 0.0
    %628 = vmatprep.subr.mxu0 0.0
    %629 = vmatpush1.msra.mxu0 0.0
    %630 = vmatprep.subr.mxu0 0.0
    %631 = vmatpush1.msra.mxu0 0.0
    %632 = vmatprep.subr.mxu0 0.0
    %633 = vmatpush1.msra.mxu0 0.0
    %634 = vmatprep.subr.mxu0 0.0
    %635 = vmatpush1.msra.mxu0 0.0
    %636 = vmatprep.subr.mxu0 0.0
    %637 = vmatpush1.msra.mxu0 0.0
    %638 = vmatprep.subr.mxu0 0.0
    %639 = vmatpush1.msra.mxu0 0.0
    %640 = vmatprep.subr.mxu0 0.0
    %641 = vmatpush1.msra.mxu0 0.0
    %642 = vmatprep.subr.mxu0 0.0
    %643 = vmatpush1.msra.mxu0 0.0
    %644 = vmatprep.mubr.f32.mxu0 0.0
    %645 = vmatmul.mubr.f32.gmra.mrb[0].mxu0 %v578
    %v646 = vpop.f32.mrb[0].mxu0
    %v647 = vadd.f32 %v574, %v646
    %v648 = vpop.f32.mrb[0].mxu0
    %649 = vdwg.mxu0
    %650 = vrot.lane.b32.xlu0 %v225, 123
    %v651 = vpop.permute.xlu0 %650
    %653 = vxpose.xlu0.b32.start [1/16] %v651, 128
    %654 = vxpose.xlu0.b32.cont [2/16] 0.0, 128
    %655 = vxpose.xlu0.b32.cont [3/16] 0.0, 128
    %656 = vxpose.xlu0.b32.cont [4/16] 0.0, 128
    %657 = vxpose.xlu0.b32.cont [5/16] 0.0, 128
    %658 = vxpose.xlu0.b32.cont [6/16] 0.0, 128
    %659 = vxpose.xlu0.b32.cont [7/16] 0.0, 128
    %660 = vxpose.xlu0.b32.cont [8/16] 0.0, 128
    %661 = vxpose.xlu0.b32.cont [9/16] 0.0, 128
    %662 = vxpose.xlu0.b32.cont [10/16] 0.0, 128
    %663 = vxpose.xlu0.b32.cont [11/16] 0.0, 128
    %664 = vxpose.xlu0.b32.cont [12/16] 0.0, 128
    %665 = vxpose.xlu0.b32.cont [13/16] 0.0, 128
    %666 = vxpose.xlu0.b32.cont [14/16] 0.0, 128
    %667 = vxpose.xlu0.b32.cont [15/16] 0.0, 128
    %668 = vxpose.xlu0.b32.end [16/16] 0.0, 128
    %v669 = vpop.trf.xlu0
    %v670 = vpop.trf.xlu0
    %v671 = vpop.trf.xlu0
    %v672 = vpop.trf.xlu0
    %v673 = vpop.trf.xlu0
    %v674 = vpop.trf.xlu0
    %v675 = vpop.trf.xlu0
    %v676 = vpop.trf.xlu0
    %v677 = vpop.trf.xlu0
    %v678 = vpop.trf.xlu0
    %v679 = vpop.trf.xlu0
    %v680 = vpop.trf.xlu0
    %v681 = vpop.trf.xlu0
    %v682 = vpop.trf.xlu0
    %v683 = vpop.trf.xlu0
    %v684 = vpop.trf.xlu0
    %685 = vset.pattern.permute.xlu0 4
    %686 = vperm.xlu0 %685, %v225
    %v687 = vpop.permute.xlu0 %686
    %v689 = vlaneseq
    %v690 = vshrl.u32 %v689, 7
    %v691 = vsub.s32 0, %v690
    %v692 = vrot.slane %v669, %v691
    %v693 = vadd.f32 %v687, %v692
    %vm694 = vcmp.gt.f32.partialorder %v693, 0.0
    %v695 = vmul.f32 %v693, 0.2
    %v696 = vsel %vm694, %v693, %v695
    %v697 = vsel %vm68, %v696, -1e+30
    %v698 = vsel %vm283, %v697, -inf
    %699 = vmax.xlane.f32.xlu0 %v698
    %v700 = vpop.xlane.xlu0 %699
    %v701 = vsub.f32 %v697, %v700
    %v702 = vmul.f32 %v701, 1.442695
    %v703 = vpow.pop %v702
    %v704 = vsel %vm283, %v703, 0.0
    %705 = vadd.xlane.f32.xlu0 %v704
    %v706 = vpop.xlane.xlu0 %705
    %v707 = vrcp.pop %v706
    %v708 = vmul.f32 %v703, %v707
    %709 = vrot.lane.b32.xlu0 %v145, 96
    %v710 = vpop.permute.xlu0 %709
    %v713 = vsel %vm283, %v708, 0
    %715 = vmatprep.subr.mxu0 0.0
    %716 = vmatpush1.msra.mxu0 %v710
    %717 = vmatprep.subr.mxu0 0.0
    %718 = vmatpush1.msra.mxu0 0.0
    %719 = vmatprep.subr.mxu0 0.0
    %720 = vmatpush1.msra.mxu0 0.0
    %721 = vmatprep.subr.mxu0 0.0
    %722 = vmatpush1.msra.mxu0 0.0
    %723 = vmatprep.subr.mxu0 0.0
    %724 = vmatpush1.msra.mxu0 0.0
    %725 = vmatprep.subr.mxu0 0.0
    %726 = vmatpush1.msra.mxu0 0.0
    %727 = vmatprep.subr.mxu0 0.0
    %728 = vmatpush1.msra.mxu0 0.0
    %729 = vmatprep.subr.mxu0 0.0
    %730 = vmatpush1.msra.mxu0 0.0
    %731 = vmatprep.subr.mxu0 0.0
    %732 = vmatpush1.msra.mxu0 0.0
    %733 = vmatprep.subr.mxu0 0.0
    %734 = vmatpush1.msra.mxu0 0.0
    %735 = vmatprep.subr.mxu0 0.0
    %736 = vmatpush1.msra.mxu0 0.0
    %737 = vmatprep.subr.mxu0 0.0
    %738 = vmatpush1.msra.mxu0 0.0
    %739 = vmatprep.subr.mxu0 0.0
    %740 = vmatpush1.msra.mxu0 0.0
    %741 = vmatprep.subr.mxu0 0.0
    %742 = vmatpush1.msra.mxu0 0.0
    %743 = vmatprep.subr.mxu0 0.0
    %744 = vmatpush1.msra.mxu0 0.0
    %745 = vmatprep.subr.mxu0 0.0
    %746 = vmatpush1.msra.mxu0 0.0
    %747 = vmatprep.subr.mxu0 0.0
    %748 = vmatpush1.msra.mxu0 0.0
    %749 = vmatprep.subr.mxu0 0.0
    %750 = vmatpush1.msra.mxu0 0.0
    %751 = vmatprep.subr.mxu0 0.0
    %752 = vmatpush1.msra.mxu0 0.0
    %753 = vmatprep.subr.mxu0 0.0
    %754 = vmatpush1.msra.mxu0 0.0
    %755 = vmatprep.subr.mxu0 0.0
    %756 = vmatpush1.msra.mxu0 0.0
    %757 = vmatprep.subr.mxu0 0.0
    %758 = vmatpush1.msra.mxu0 0.0
    %759 = vmatprep.subr.mxu0 0.0
    %760 = vmatpush1.msra.mxu0 0.0
    %761 = vmatprep.subr.mxu0 0.0
    %762 = vmatpush1.msra.mxu0 0.0
    %763 = vmatprep.subr.mxu0 0.0
    %764 = vmatpush1.msra.mxu0 0.0
    %765 = vmatprep.subr.mxu0 0.0
    %766 = vmatpush1.msra.mxu0 0.0
    %767 = vmatprep.subr.mxu0 0.0
    %768 = vmatpush1.msra.mxu0 0.0
    %769 = vmatprep.subr.mxu0 0.0
    %770 = vmatpush1.msra.mxu0 0.0
    %771 = vmatprep.subr.mxu0 0.0
    %772 = vmatpush1.msra.mxu0 0.0
    %773 = vmatprep.subr.mxu0 0.0
    %774 = vmatpush1.msra.mxu0 0.0
    %775 = vmatprep.subr.mxu0 0.0
    %776 = vmatpush1.msra.mxu0 0.0
    %777 = vmatprep.subr.mxu0 0.0
    %778 = vmatpush1.msra.mxu0 0.0
    %779 = vmatprep.mubr.f32.mxu0 0.0
    %780 = vmatmul.mubr.f32.gmra.mrb[0].mxu0 %v713
    %v781 = vpop.f32.mrb[0].mxu0
    %v782 = vadd.f32 0.0, %v781
    %v783 = vpop.f32.mrb[0].mxu0
    %784 = vdwg.mxu0
    %v786 = vsel %vm503, %v782, 0
    %788 = vmatprep.subr.mxu0 0.0
    %789 = vmatpush1.msra.mxu0 %v232
    %790 = vmatprep.subr.mxu0 0.0
    %791 = vmatpush1.msra.mxu0 %v233
    %792 = vmatprep.subr.mxu0 0.0
    %793 = vmatpush1.msra.mxu0 0.0
    %794 = vmatprep.subr.mxu0 0.0
    %795 = vmatpush1.msra.mxu0 0.0
    %796 = vmatprep.subr.mxu0 0.0
    %797 = vmatpush1.msra.mxu0 0.0
    %798 = vmatprep.subr.mxu0 0.0
    %799 = vmatpush1.msra.mxu0 0.0
    %800 = vmatprep.subr.mxu0 0.0
    %801 = vmatpush1.msra.mxu0 0.0
    %802 = vmatprep.subr.mxu0 0.0
    %803 = vmatpush1.msra.mxu0 0.0
    %804 = vmatprep.subr.mxu0 0.0
    %805 = vmatpush1.msra.mxu0 0.0
    %806 = vmatprep.subr.mxu0 0.0
    %807 = vmatpush1.msra.mxu0 0.0
    %808 = vmatprep.subr.mxu0 0.0
    %809 = vmatpush1.msra.mxu0 0.0
    %810 = vmatprep.subr.mxu0 0.0
    %811 = vmatpush1.msra.mxu0 0.0
    %812 = vmatprep.subr.mxu0 0.0
    %813 = vmatpush1.msra.mxu0 0.0
    %814 = vmatprep.subr.mxu0 0.0
    %815 = vmatpush1.msra.mxu0 0.0
    %816 = vmatprep.subr.mxu0 0.0
    %817 = vmatpush1.msra.mxu0 0.0
    %818 = vmatprep.subr.mxu0 0.0
    %819 = vmatpush1.msra.mxu0 0.0
    %820 = vmatprep.subr.mxu0 0.0
    %821 = vmatpush1.msra.mxu0 0.0
    %822 = vmatprep.subr.mxu0 0.0
    %823 = vmatpush1.msra.mxu0 0.0
    %824 = vmatprep.subr.mxu0 0.0
    %825 = vmatpush1.msra.mxu0 0.0
    %826 = vmatprep.subr.mxu0 0.0
    %827 = vmatpush1.msra.mxu0 0.0
    %828 = vmatprep.subr.mxu0 0.0
    %829 = vmatpush1.msra.mxu0 0.0
    %830 = vmatprep.subr.mxu0 0.0
    %831 = vmatpush1.msra.mxu0 0.0
    %832 = vmatprep.subr.mxu0 0.0
    %833 = vmatpush1.msra.mxu0 0.0
    %834 = vmatprep.subr.mxu0 0.0
    %835 = vmatpush1.msra.mxu0 0.0
    %836 = vmatprep.subr.mxu0 0.0
    %837 = vmatpush1.msra.mxu0 0.0
    %838 = vmatprep.subr.mxu0 0.0
    %839 = vmatpush1.msra.mxu0 0.0
    %840 = vmatprep.subr.mxu0 0.0
    %841 = vmatpush1.msra.mxu0 0.0
    %842 = vmatprep.subr.mxu0 0.0
    %843 = vmatpush1.msra.mxu0 0.0
    %844 = vmatprep.subr.mxu0 0.0
    %845 = vmatpush1.msra.mxu0 0.0
    %846 = vmatprep.subr.mxu0 0.0
    %847 = vmatpush1.msra.mxu0 0.0
    %848 = vmatprep.subr.mxu0 0.0
    %849 = vmatpush1.msra.mxu0 0.0
    %850 = vmatprep.subr.mxu0 0.0
    %851 = vmatpush1.msra.mxu0 0.0
    %852 = vmatprep.mubr.f32.mxu0 0.0
    %853 = vmatmul.mubr.f32.gmra.mrb[0].mxu0 %v786
    %v854 = vpop.f32.mrb[0].mxu0
    %v855 = vadd.f32 0.0, %v854
    %v856 = vpop.f32.mrb[0].mxu0
    %857 = vdwg.mxu0
    %v858 = vadd.f32 %v647, %v855
    %v859 = vld [vmem:[%s5] sm:$0x1]
    %v861 = vlaneseq
    %v862 = vshrl.u32 %v861, 7
    %v863 = vsub.s32 0, %v862
    %v864 = vrot.slane %v859, %v863
    %v866 = vadd.f32 %v858, %v864
    %v867 = vsel %vm503, %v866, 0.0
    %v868 = vrot.slane %v867, 4
    %v869 = vadd.f32 %v867, %v868
    %v870 = vrot.slane %v869, 2
    %v871 = vadd.f32 %v869, %v870
    %v872 = vrot.slane %v871, 1
    %v873 = vadd.f32 %v871, %v872
    %v874 = vrcp.pop 8.0
    %v875 = vmul.f32 %v873, %v874
    %v876 = vsub.f32 %v866, %v875
    %v877 = vmul.f32 %v876, %v876
    %v878 = vsel %vm503, %v877, 0.0
    %v879 = vrot.slane %v878, 4
    %v880 = vadd.f32 %v878, %v879
    %v881 = vrot.slane %v880, 2
    %v882 = vadd.f32 %v880, %v881
    %v883 = vrot.slane %v882, 1
    %v884 = vadd.f32 %v882, %v883
    %v885 = vmul.f32 %v884, %v874
    %v886 = vadd.f32 %v885, 1e-05
    %v887 = vrsqrt.pop %v886
    %v888 = vmul.f32 %v876, %v887
    %v889 = vld [vmem:[%s6] sm:$0x1]
    %v891 = vlaneseq
    %v892 = vshrl.u32 %v891, 7
    %v893 = vsub.s32 0, %v892
    %v894 = vrot.slane %v889, %v893
    %v896 = vmul.f32 %v888, %v894
    %v897 = vld [vmem:[%s7] sm:$0x1]
    %v899 = vlaneseq
    %v900 = vshrl.u32 %v899, 7
    %v901 = vsub.s32 0, %v900
    %v902 = vrot.slane %v897, %v901
    %v904 = vadd.f32 %v896, %v902
    %v905 = vsel %vm283, %v67, 0.0
    %906 = vadd.xlane.f32.xlu0 %v905
    %v907 = vpop.xlane.xlu0 %906
    %v908 = vrsqrt.pop %v907
    %v909 = vld [vmem:[%s8] sm:$0xff]
    %v910 = vld [vmem:[%s8 + $0x8] sm:$0xff]
    %v912 = vsel %vm503, %v904, 0
    %914 = vmatprep.subr.mxu0 0.0
    %915 = vmatpush1.msra.mxu0 %v909
    %916 = vmatprep.subr.mxu0 0.0
    %917 = vmatpush1.msra.mxu0 %v910
    %918 = vmatprep.subr.mxu0 0.0
    %919 = vmatpush1.msra.mxu0 0.0
    %920 = vmatprep.subr.mxu0 0.0
    %921 = vmatpush1.msra.mxu0 0.0
    %922 = vmatprep.subr.mxu0 0.0
    %923 = vmatpush1.msra.mxu0 0.0
    %924 = vmatprep.subr.mxu0 0.0
    %925 = vmatpush1.msra.mxu0 0.0
    %926 = vmatprep.subr.mxu0 0.0
    %927 = vmatpush1.msra.mxu0 0.0
    %928 = vmatprep.subr.mxu0 0.0
    %929 = vmatpush1.msra.mxu0 0.0
    %930 = vmatprep.subr.mxu0 0.0
    %931 = vmatpush1.msra.mxu0 0.0
    %932 = vmatprep.subr.mxu0 0.0
    %933 = vmatpush1.msra.mxu0 0.0
    %934 = vmatprep.subr.mxu0 0.0
    %935 = vmatpush1.msra.mxu0 0.0
    %936 = vmatprep.subr.mxu0 0.0
    %937 = vmatpush1.msra.mxu0 0.0
    %938 = vmatprep.subr.mxu0 0.0
    %939 = vmatpush1.msra.mxu0 0.0
    %940 = vmatprep.subr.mxu0 0.0
    %941 = vmatpush1.msra.mxu0 0.0
    %942 = vmatprep.subr.mxu0 0.0
    %943 = vmatpush1.msra.mxu0 0.0
    %944 = vmatprep.subr.mxu0 0.0
    %945 = vmatpush1.msra.mxu0 0.0
    %946 = vmatprep.subr.mxu0 0.0
    %947 = vmatpush1.msra.mxu0 0.0
    %948 = vmatprep.subr.mxu0 0.0
    %949 = vmatpush1.msra.mxu0 0.0
    %950 = vmatprep.subr.mxu0 0.0
    %951 = vmatpush1.msra.mxu0 0.0
    %952 = vmatprep.subr.mxu0 0.0
    %953 = vmatpush1.msra.mxu0 0.0
    %954 = vmatprep.subr.mxu0 0.0
    %955 = vmatpush1.msra.mxu0 0.0
    %956 = vmatprep.subr.mxu0 0.0
    %957 = vmatpush1.msra.mxu0 0.0
    %958 = vmatprep.subr.mxu0 0.0
    %959 = vmatpush1.msra.mxu0 0.0
    %960 = vmatprep.subr.mxu0 0.0
    %961 = vmatpush1.msra.mxu0 0.0
    %962 = vmatprep.subr.mxu0 0.0
    %963 = vmatpush1.msra.mxu0 0.0
    %964 = vmatprep.subr.mxu0 0.0
    %965 = vmatpush1.msra.mxu0 0.0
    %966 = vmatprep.subr.mxu0 0.0
    %967 = vmatpush1.msra.mxu0 0.0
    %968 = vmatprep.subr.mxu0 0.0
    %969 = vmatpush1.msra.mxu0 0.0
    %970 = vmatprep.subr.mxu0 0.0
    %971 = vmatpush1.msra.mxu0 0.0
    %972 = vmatprep.subr.mxu0 0.0
    %973 = vmatpush1.msra.mxu0 0.0
    %974 = vmatprep.subr.mxu0 0.0
    %975 = vmatpush1.msra.mxu0 0.0
    %976 = vmatprep.subr.mxu0 0.0
    %977 = vmatpush1.msra.mxu0 0.0
    %978 = vmatprep.mubr.f32.mxu0 0.0
    %979 = vmatmul.mubr.f32.gmra.mrb[0].mxu0 %v912
    %v980 = vpop.f32.mrb[0].mxu0
    %v981 = vadd.f32 0.0, %v980
    %v982 = vpop.f32.mrb[0].mxu0
    %983 = vdwg.mxu0
    %v984 = vmul.f32 %v981, %v908
    %v986 = vsel %vm283, %v67, 0
    %988 = vmatprep.subr.mxu0 0.0
    %989 = vmatpush1.msra.mxu0 %v984
    %990 = vmatprep.subr.mxu0 0.0
    %991 = vmatpush1.msra.mxu0 0.0
    %992 = vmatprep.subr.mxu0 0.0
    %993 = vmatpush1.msra.mxu0 0.0
    %994 = vmatprep.subr.mxu0 0.0
    %995 = vmatpush1.msra.mxu0 0.0
    %996 = vmatprep.subr.mxu0 0.0
    %997 = vmatpush1.msra.mxu0 0.0
    %998 = vmatprep.subr.mxu0 0.0
    %999 = vmatpush1.msra.mxu0 0.0
    %1000 = vmatprep.subr.mxu0 0.0
    %1001 = vmatpush1.msra.mxu0 0.0
    %1002 = vmatprep.subr.mxu0 0.0
    %1003 = vmatpush1.msra.mxu0 0.0
    %1004 = vmatprep.subr.mxu0 0.0
    %1005 = vmatpush1.msra.mxu0 0.0
    %1006 = vmatprep.subr.mxu0 0.0
    %1007 = vmatpush1.msra.mxu0 0.0
    %1008 = vmatprep.subr.mxu0 0.0
    %1009 = vmatpush1.msra.mxu0 0.0
    %1010 = vmatprep.subr.mxu0 0.0
    %1011 = vmatpush1.msra.mxu0 0.0
    %1012 = vmatprep.subr.mxu0 0.0
    %1013 = vmatpush1.msra.mxu0 0.0
    %1014 = vmatprep.subr.mxu0 0.0
    %1015 = vmatpush1.msra.mxu0 0.0
    %1016 = vmatprep.subr.mxu0 0.0
    %1017 = vmatpush1.msra.mxu0 0.0
    %1018 = vmatprep.subr.mxu0 0.0
    %1019 = vmatpush1.msra.mxu0 0.0
    %1020 = vmatprep.subr.mxu0 0.0
    %1021 = vmatpush1.msra.mxu0 0.0
    %1022 = vmatprep.subr.mxu0 0.0
    %1023 = vmatpush1.msra.mxu0 0.0
    %1024 = vmatprep.subr.mxu0 0.0
    %1025 = vmatpush1.msra.mxu0 0.0
    %1026 = vmatprep.subr.mxu0 0.0
    %1027 = vmatpush1.msra.mxu0 0.0
    %1028 = vmatprep.subr.mxu0 0.0
    %1029 = vmatpush1.msra.mxu0 0.0
    %1030 = vmatprep.subr.mxu0 0.0
    %1031 = vmatpush1.msra.mxu0 0.0
    %1032 = vmatprep.subr.mxu0 0.0
    %1033 = vmatpush1.msra.mxu0 0.0
    %1034 = vmatprep.subr.mxu0 0.0
    %1035 = vmatpush1.msra.mxu0 0.0
    %1036 = vmatprep.subr.mxu0 0.0
    %1037 = vmatpush1.msra.mxu0 0.0
    %1038 = vmatprep.subr.mxu0 0.0
    %1039 = vmatpush1.msra.mxu0 0.0
    %1040 = vmatprep.subr.mxu0 0.0
    %1041 = vmatpush1.msra.mxu0 0.0
    %1042 = vmatprep.subr.mxu0 0.0
    %1043 = vmatpush1.msra.mxu0 0.0
    %1044 = vmatprep.subr.mxu0 0.0
    %1045 = vmatpush1.msra.mxu0 0.0
    %1046 = vmatprep.subr.mxu0 0.0
    %1047 = vmatpush1.msra.mxu0 0.0
    %1048 = vmatprep.subr.mxu0 0.0
    %1049 = vmatpush1.msra.mxu0 0.0
    %1050 = vmatprep.subr.mxu0 0.0
    %1051 = vmatpush1.msra.mxu0 0.0
    %1052 = vmatprep.mubr.f32.mxu0 0.0
    %1053 = vmatmul.mubr.f32.gmra.mrb[0].mxu0 %v986
    %v1054 = vpop.f32.mrb[0].mxu0
    %v1055 = vadd.f32 0.0, %v1054
    %v1056 = vpop.f32.mrb[0].mxu0
    %1057 = vdwg.mxu0
    %v1058 = vmul.f32 %v908, %v1055
    %v1059 = vld [vmem:[%s9] sm:$0x1]
    %v1061 = vlaneseq
    %v1062 = vshrl.u32 %v1061, 7
    %v1063 = vsub.s32 0, %v1062
    %v1064 = vrot.slane %v1059, %v1063
    %v1066 = vadd.f32 %v1058, %v1064
    %v1067 = vsel %vm283, %v1066, 0.0
    %v1068 = vrot.slane %v1067, 4
    %v1069 = vadd.f32 %v1067, %v1068
    %v1070 = vrot.slane %v1069, 2
    %v1071 = vadd.f32 %v1069, %v1070
    %v1072 = vrot.slane %v1071, 1
    %v1073 = vadd.f32 %v1071, %v1072
    %v1074 = vmul.f32 %v1073, %v874
    %v1075 = vsub.f32 %v1066, %v1074
    %v1076 = vmul.f32 %v1075, %v1075
    %v1077 = vsel %vm283, %v1076, 0.0
    %v1078 = vrot.slane %v1077, 4
    %v1079 = vadd.f32 %v1077, %v1078
    %v1080 = vrot.slane %v1079, 2
    %v1081 = vadd.f32 %v1079, %v1080
    %v1082 = vrot.slane %v1081, 1
    %v1083 = vadd.f32 %v1081, %v1082
    %v1084 = vmul.f32 %v1083, %v874
    %v1085 = vadd.f32 %v1084, 1e-05
    %v1086 = vrsqrt.pop %v1085
    %v1087 = vmul.f32 %v1075, %v1086
    %v1088 = vld [vmem:[%s10] sm:$0x1]
    %v1090 = vlaneseq
    %v1091 = vshrl.u32 %v1090, 7
    %v1092 = vsub.s32 0, %v1091
    %v1093 = vrot.slane %v1088, %v1092
    %v1095 = vmul.f32 %v1087, %v1093
    %v1096 = vld [vmem:[%s11] sm:$0x1]
    %v1098 = vlaneseq
    %v1099 = vshrl.u32 %v1098, 7
    %v1100 = vsub.s32 0, %v1099
    %v1101 = vrot.slane %v1096, %v1100
    %v1103 = vadd.f32 %v1095, %v1101
    %v1104 = vld [vmem:[%s12] sm:$0xff]
    %v1105 = vld [vmem:[%s13] sm:$0x1]
    %v1107 = vlaneseq
    %v1108 = vshrl.u32 %v1107, 7
    %v1109 = vsub.s32 0, %v1108
    %v1110 = vrot.slane %v1105, %v1109
    %v1113 = vsel %vm283, %v1103, 0
    %1115 = vmatprep.subr.mxu0 0.0
    %1116 = vmatpush1.msra.mxu0 %v1104
    %1117 = vmatprep.subr.mxu0 0.0
    %1118 = vmatpush1.msra.mxu0 0.0
    %1119 = vmatprep.subr.mxu0 0.0
    %1120 = vmatpush1.msra.mxu0 0.0
    %1121 = vmatprep.subr.mxu0 0.0
    %1122 = vmatpush1.msra.mxu0 0.0
    %1123 = vmatprep.subr.mxu0 0.0
    %1124 = vmatpush1.msra.mxu0 0.0
    %1125 = vmatprep.subr.mxu0 0.0
    %1126 = vmatpush1.msra.mxu0 0.0
    %1127 = vmatprep.subr.mxu0 0.0
    %1128 = vmatpush1.msra.mxu0 0.0
    %1129 = vmatprep.subr.mxu0 0.0
    %1130 = vmatpush1.msra.mxu0 0.0
    %1131 = vmatprep.subr.mxu0 0.0
    %1132 = vmatpush1.msra.mxu0 0.0
    %1133 = vmatprep.subr.mxu0 0.0
    %1134 = vmatpush1.msra.mxu0 0.0
    %1135 = vmatprep.subr.mxu0 0.0
    %1136 = vmatpush1.msra.mxu0 0.0
    %1137 = vmatprep.subr.mxu0 0.0
    %1138 = vmatpush1.msra.mxu0 0.0
    %1139 = vmatprep.subr.mxu0 0.0
    %1140 = vmatpush1.msra.mxu0 0.0
    %1141 = vmatprep.subr.mxu0 0.0
    %1142 = vmatpush1.msra.mxu0 0.0
    %1143 = vmatprep.subr.mxu0 0.0
    %1144 = vmatpush1.msra.mxu0 0.0
    %1145 = vmatprep.subr.mxu0 0.0
    %1146 = vmatpush1.msra.mxu0 0.0
    %1147 = vmatprep.subr.mxu0 0.0
    %1148 = vmatpush1.msra.mxu0 0.0
    %1149 = vmatprep.subr.mxu0 0.0
    %1150 = vmatpush1.msra.mxu0 0.0
    %1151 = vmatprep.subr.mxu0 0.0
    %1152 = vmatpush1.msra.mxu0 0.0
    %1153 = vmatprep.subr.mxu0 0.0
    %1154 = vmatpush1.msra.mxu0 0.0
    %1155 = vmatprep.subr.mxu0 0.0
    %1156 = vmatpush1.msra.mxu0 0.0
    %1157 = vmatprep.subr.mxu0 0.0
    %1158 = vmatpush1.msra.mxu0 0.0
    %1159 = vmatprep.subr.mxu0 0.0
    %1160 = vmatpush1.msra.mxu0 0.0
    %1161 = vmatprep.subr.mxu0 0.0
    %1162 = vmatpush1.msra.mxu0 0.0
    %1163 = vmatprep.subr.mxu0 0.0
    %1164 = vmatpush1.msra.mxu0 0.0
    %1165 = vmatprep.subr.mxu0 0.0
    %1166 = vmatpush1.msra.mxu0 0.0
    %1167 = vmatprep.subr.mxu0 0.0
    %1168 = vmatpush1.msra.mxu0 0.0
    %1169 = vmatprep.subr.mxu0 0.0
    %1170 = vmatpush1.msra.mxu0 0.0
    %1171 = vmatprep.subr.mxu0 0.0
    %1172 = vmatpush1.msra.mxu0 0.0
    %1173 = vmatprep.subr.mxu0 0.0
    %1174 = vmatpush1.msra.mxu0 0.0
    %1175 = vmatprep.subr.mxu0 0.0
    %1176 = vmatpush1.msra.mxu0 0.0
    %1177 = vmatprep.subr.mxu0 0.0
    %1178 = vmatpush1.msra.mxu0 0.0
    %1179 = vmatprep.mubr.f32.mxu0 0.0
    %1180 = vmatmul.mubr.f32.gmra.mrb[0].mxu0 %v1113
    %v1181 = vpop.f32.mrb[0].mxu0
    %v1182 = vadd.f32 %v1110, %v1181
    %v1183 = vpop.f32.mrb[0].mxu0
    %1184 = vdwg.mxu0
    %vm1185 = vcmp.gt.f32.partialorder %v1182, 0.0
    %v1186 = vmul.f32 %v1182, 0.01
    %v1187 = vsel %vm1185, %v1182, %v1186
    %v1188 = vld [vmem:[%s14] sm:$0xff]
    %v1189 = vld [vmem:[%s14 + $0x8] sm:$0xff]
    %v1190 = vld [vmem:[%s14 + $0x10] sm:$0xff]
    %v1191 = vld [vmem:[%s14 + $0x18] sm:$0xff]
    %v1192 = vld [vmem:[%s15] sm:$0x1]
    %v1194 = vlaneseq
    %v1195 = vshrl.u32 %v1194, 7
    %v1196 = vsub.s32 0, %v1195
    %v1197 = vrot.slane %v1192, %v1196
    %vm1199 = vcmask 261120
    %v1201 = vsel %vm1199, %v1187, 0
    %1203 = vmatprep.subr.mxu0 0.0
    %1204 = vmatpush1.msra.mxu0 %v1188
    %1205 = vmatprep.subr.mxu0 0.0
    %1206 = vmatpush1.msra.mxu0 %v1189
    %1207 = vmatprep.subr.mxu0 0.0
    %1208 = vmatpush1.msra.mxu0 %v1190
    %1209 = vmatprep.subr.mxu0 0.0
    %1210 = vmatpush1.msra.mxu0 %v1191
    %1211 = vmatprep.subr.mxu0 0.0
    %1212 = vmatpush1.msra.mxu0 0.0
    %1213 = vmatprep.subr.mxu0 0.0
    %1214 = vmatpush1.msra.mxu0 0.0
    %1215 = vmatprep.subr.mxu0 0.0
    %1216 = vmatpush1.msra.mxu0 0.0
    %1217 = vmatprep.subr.mxu0 0.0
    %1218 = vmatpush1.msra.mxu0 0.0
    %1219 = vmatprep.subr.mxu0 0.0
    %1220 = vmatpush1.msra.mxu0 0.0
    %1221 = vmatprep.subr.mxu0 0.0
    %1222 = vmatpush1.msra.mxu0 0.0
    %1223 = vmatprep.subr.mxu0 0.0
    %1224 = vmatpush1.msra.mxu0 0.0
    %1225 = vmatprep.subr.mxu0 0.0
    %1226 = vmatpush1.msra.mxu0 0.0
    %1227 = vmatprep.subr.mxu0 0.0
    %1228 = vmatpush1.msra.mxu0 0.0
    %1229 = vmatprep.subr.mxu0 0.0
    %1230 = vmatpush1.msra.mxu0 0.0
    %1231 = vmatprep.subr.mxu0 0.0
    %1232 = vmatpush1.msra.mxu0 0.0
    %1233 = vmatprep.subr.mxu0 0.0
    %1234 = vmatpush1.msra.mxu0 0.0
    %1235 = vmatprep.subr.mxu0 0.0
    %1236 = vmatpush1.msra.mxu0 0.0
    %1237 = vmatprep.subr.mxu0 0.0
    %1238 = vmatpush1.msra.mxu0 0.0
    %1239 = vmatprep.subr.mxu0 0.0
    %1240 = vmatpush1.msra.mxu0 0.0
    %1241 = vmatprep.subr.mxu0 0.0
    %1242 = vmatpush1.msra.mxu0 0.0
    %1243 = vmatprep.subr.mxu0 0.0
    %1244 = vmatpush1.msra.mxu0 0.0
    %1245 = vmatprep.subr.mxu0 0.0
    %1246 = vmatpush1.msra.mxu0 0.0
    %1247 = vmatprep.subr.mxu0 0.0
    %1248 = vmatpush1.msra.mxu0 0.0
    %1249 = vmatprep.subr.mxu0 0.0
    %1250 = vmatpush1.msra.mxu0 0.0
    %1251 = vmatprep.subr.mxu0 0.0
    %1252 = vmatpush1.msra.mxu0 0.0
    %1253 = vmatprep.subr.mxu0 0.0
    %1254 = vmatpush1.msra.mxu0 0.0
    %1255 = vmatprep.subr.mxu0 0.0
    %1256 = vmatpush1.msra.mxu0 0.0
    %1257 = vmatprep.subr.mxu0 0.0
    %1258 = vmatpush1.msra.mxu0 0.0
    %1259 = vmatprep.subr.mxu0 0.0
    %1260 = vmatpush1.msra.mxu0 0.0
    %1261 = vmatprep.subr.mxu0 0.0
    %1262 = vmatpush1.msra.mxu0 0.0
    %1263 = vmatprep.subr.mxu0 0.0
    %1264 = vmatpush1.msra.mxu0 0.0
    %1265 = vmatprep.subr.mxu0 0.0
    %1266 = vmatpush1.msra.mxu0 0.0
    %1267 = vmatprep.mubr.f32.mxu0 0.0
    %1268 = vmatmul.mubr.f32.gmra.mrb[0].mxu0 %v1201
    %v1269 = vpop.f32.mrb[0].mxu0
    %v1270 = vadd.f32 %v1197, %v1269
    %v1271 = vpop.f32.mrb[0].mxu0
    %1272 = vdwg.mxu0
    %vm1273 = vcmp.gt.f32.partialorder %v1270, 0.0
    %v1274 = vmul.f32 %v1270, 0.01
    %v1275 = vsel %vm1273, %v1270, %v1274
    %v1276 = vld [vmem:[%s16] sm:$0xff]
    %v1277 = vld [vmem:[%s16 + $0x8] sm:$0xff]
    %v1278 = vld [vmem:[%s17] sm:$0x1]
    %v1280 = vlaneseq
    %v1281 = vshrl.u32 %v1280, 7
    %v1282 = vsub.s32 0, %v1281
    %v1283 = vrot.slane %v1278, %v1282
    %v1286 = vsel %vm503, %v1275, 0
    %1288 = vmatprep.subr.mxu0 0.0
    %1289 = vmatpush1.msra.mxu0 %v1276
    %1290 = vmatprep.subr.mxu0 0.0
    %1291 = vmatpush1.msra.mxu0 %v1277
    %1292 = vmatprep.subr.mxu0 0.0
    %1293 = vmatpush1.msra.mxu0 0.0
    %1294 = vmatprep.subr.mxu0 0.0
    %1295 = vmatpush1.msra.mxu0 0.0
    %1296 = vmatprep.subr.mxu0 0.0
    %1297 = vmatpush1.msra.mxu0 0.0
    %1298 = vmatprep.subr.mxu0 0.0
    %1299 = vmatpush1.msra.mxu0 0.0
    %1300 = vmatprep.subr.mxu0 0.0
    %1301 = vmatpush1.msra.mxu0 0.0
    %1302 = vmatprep.subr.mxu0 0.0
    %1303 = vmatpush1.msra.mxu0 0.0
    %1304 = vmatprep.subr.mxu0 0.0
    %1305 = vmatpush1.msra.mxu0 0.0
    %1306 = vmatprep.subr.mxu0 0.0
    %1307 = vmatpush1.msra.mxu0 0.0
    %1308 = vmatprep.subr.mxu0 0.0
    %1309 = vmatpush1.msra.mxu0 0.0
    %1310 = vmatprep.subr.mxu0 0.0
    %1311 = vmatpush1.msra.mxu0 0.0
    %1312 = vmatprep.subr.mxu0 0.0
    %1313 = vmatpush1.msra.mxu0 0.0
    %1314 = vmatprep.subr.mxu0 0.0
    %1315 = vmatpush1.msra.mxu0 0.0
    %1316 = vmatprep.subr.mxu0 0.0
    %1317 = vmatpush1.msra.mxu0 0.0
    %1318 = vmatprep.subr.mxu0 0.0
    %1319 = vmatpush1.msra.mxu0 0.0
    %1320 = vmatprep.subr.mxu0 0.0
    %1321 = vmatpush1.msra.mxu0 0.0
    %1322 = vmatprep.subr.mxu0 0.0
    %1323 = vmatpush1.msra.mxu0 0.0
    %1324 = vmatprep.subr.mxu0 0.0
    %1325 = vmatpush1.msra.mxu0 0.0
    %1326 = vmatprep.subr.mxu0 0.0
    %1327 = vmatpush1.msra.mxu0 0.0
    %1328 = vmatprep.subr.mxu0 0.0
    %1329 = vmatpush1.msra.mxu0 0.0
    %1330 = vmatprep.subr.mxu0 0.0
    %1331 = vmatpush1.msra.mxu0 0.0
    %1332 = vmatprep.subr.mxu0 0.0
    %1333 = vmatpush1.msra.mxu0 0.0
    %1334 = vmatprep.subr.mxu0 0.0
    %1335 = vmatpush1.msra.mxu0 0.0
    %1336 = vmatprep.subr.mxu0 0.0
    %1337 = vmatpush1.msra.mxu0 0.0
    %1338 = vmatprep.subr.mxu0 0.0
    %1339 = vmatpush1.msra.mxu0 0.0
    %1340 = vmatprep.subr.mxu0 0.0
    %1341 = vmatpush1.msra.mxu0 0.0
    %1342 = vmatprep.subr.mxu0 0.0
    %1343 = vmatpush1.msra.mxu0 0.0
    %1344 = vmatprep.subr.mxu0 0.0
    %1345 = vmatpush1.msra.mxu0 0.0
    %1346 = vmatprep.subr.mxu0 0.0
    %1347 = vmatpush1.msra.mxu0 0.0
    %1348 = vmatprep.subr.mxu0 0.0
    %1349 = vmatpush1.msra.mxu0 0.0
    %1350 = vmatprep.subr.mxu0 0.0
    %1351 = vmatpush1.msra.mxu0 0.0
    %1352 = vmatprep.mubr.f32.mxu0 0.0
    %1353 = vmatmul.mubr.f32.gmra.mrb[0].mxu0 %v1286
    %v1354 = vpop.f32.mrb[0].mxu0
    %v1355 = vadd.f32 %v1283, %v1354
    %v1356 = vpop.f32.mrb[0].mxu0
    %1357 = vdwg.mxu0
    %vm1358 = vcmp.gt.f32.partialorder %v1355, 0.0
    %v1359 = vmul.f32 %v1355, 0.01
    %v1360 = vsel %vm1358, %v1355, %v1359
    %v1361 = vld [vmem:[%s18] sm:$0xff]
    %v1362 = vld [vmem:[%s19] sm:$0x1]
    %v1364 = vlaneseq
    %v1365 = vshrl.u32 %v1364, 7
    %v1366 = vsub.s32 0, %v1365
    %v1367 = vrot.slane %v1362, %v1366
    %v1370 = vsel %vm283, %v1360, 0
    %1372 = vmatprep.subr.mxu0 0.0
    %1373 = vmatpush1.msra.mxu0 %v1361
    %1374 = vmatprep.subr.mxu0 0.0
    %1375 = vmatpush1.msra.mxu0 0.0
    %1376 = vmatprep.subr.mxu0 0.0
    %1377 = vmatpush1.msra.mxu0 0.0
    %1378 = vmatprep.subr.mxu0 0.0
    %1379 = vmatpush1.msra.mxu0 0.0
    %1380 = vmatprep.subr.mxu0 0.0
    %1381 = vmatpush1.msra.mxu0 0.0
    %1382 = vmatprep.subr.mxu0 0.0
    %1383 = vmatpush1.msra.mxu0 0.0
    %1384 = vmatprep.subr.mxu0 0.0
    %1385 = vmatpush1.msra.mxu0 0.0
    %1386 = vmatprep.subr.mxu0 0.0
    %1387 = vmatpush1.msra.mxu0 0.0
    %1388 = vmatprep.subr.mxu0 0.0
    %1389 = vmatpush1.msra.mxu0 0.0
    %1390 = vmatprep.subr.mxu0 0.0
    %1391 = vmatpush1.msra.mxu0 0.0
    %1392 = vmatprep.subr.mxu0 0.0
    %1393 = vmatpush1.msra.mxu0 0.0
    %1394 = vmatprep.subr.mxu0 0.0
    %1395 = vmatpush1.msra.mxu0 0.0
    %1396 = vmatprep.subr.mxu0 0.0
    %1397 = vmatpush1.msra.mxu0 0.0
    %1398 = vmatprep.subr.mxu0 0.0
    %1399 = vmatpush1.msra.mxu0 0.0
    %1400 = vmatprep.subr.mxu0 0.0
    %1401 = vmatpush1.msra.mxu0 0.0
    %1402 = vmatprep.subr.mxu0 0.0
    %1403 = vmatpush1.msra.mxu0 0.0
    %1404 = vmatprep.subr.mxu0 0.0
    %1405 = vmatpush1.msra.mxu0 0.0
    %1406 = vmatprep.subr.mxu0 0.0
    %1407 = vmatpush1.msra.mxu0 0.0
    %1408 = vmatprep.subr.mxu0 0.0
    %1409 = vmatpush1.msra.mxu0 0.0
    %1410 = vmatprep.subr.mxu0 0.0
    %1411 = vmatpush1.msra.mxu0 0.0
    %1412 = vmatprep.subr.mxu0 0.0
    %1413 = vmatpush1.msra.mxu0 0.0
    %1414 = vmatprep.subr.mxu0 0.0
    %1415 = vmatpush1.msra.mxu0 0.0
    %1416 = vmatprep.subr.mxu0 0.0
    %1417 = vmatpush1.msra.mxu0 0.0
    %1418 = vmatprep.subr.mxu0 0.0
    %1419 = vmatpush1.msra.mxu0 0.0
    %1420 = vmatprep.subr.mxu0 0.0
    %1421 = vmatpush1.msra.mxu0 0.0
    %1422 = vmatprep.subr.mxu0 0.0
    %1423 = vmatpush1.msra.mxu0 0.0
    %1424 = vmatprep.subr.mxu0 0.0
    %1425 = vmatpush1.msra.mxu0 0.0
    %1426 = vmatprep.subr.mxu0 0.0
    %1427 = vmatpush1.msra.mxu0 0.0
    %1428 = vmatprep.subr.mxu0 0.0
    %1429 = vmatpush1.msra.mxu0 0.0
    %1430 = vmatprep.subr.mxu0 0.0
    %1431 = vmatpush1.msra.mxu0 0.0
    %1432 = vmatprep.subr.mxu0 0.0
    %1433 = vmatpush1.msra.mxu0 0.0
    %1434 = vmatprep.subr.mxu0 0.0
    %1435 = vmatpush1.msra.mxu0 0.0
    %1436 = vmatprep.mubr.f32.mxu0 0.0
    %1437 = vmatmul.mubr.f32.gmra.mrb[0].mxu0 %v1370
    %v1438 = vpop.f32.mrb[0].mxu0
    %v1439 = vadd.f32 %v1367, %v1438
    %v1440 = vpop.f32.mrb[0].mxu0
    %1441 = vdwg.mxu0
    %1442 = vst.msk [vmem:[#allocation2] sm:$0xff] %vm503, %v1439
    // Predicated region
    $region82: #{tpu_custom_call.1} parent=1 // pred_check
      _
    $region83: #{tpu_custom_call.1} parent=1 // pred_check_branch
      %1444 = sbr.rel (0) target = $region85
    $region84: #{tpu_custom_call.1} parent=1 // pred_region
      %s1446 = ssub.s32 128, 128
      %1447 = vsyncadd [#allocation3], %s1446
      %s1449 = sshll.u32 [#allocation2], 4
      %s1450 = int_to_ptr.vmem [resolvable:$true] %s1449
      %1452 = dma.vmem_to_hbm [thread:$0]  %s1450, 128, %s20, [#allocation3]
    $region85: #{tpu_custom_call.1} parent=1 // pred_fallthru
      _
    // Predicated region
    $region86: #{tpu_custom_call.1} parent=1 // pred_check
      _
    $region87: #{tpu_custom_call.1} parent=1 // pred_check_branch
      %1454 = sbr.rel (0) target = $region89
    $region88: #{tpu_custom_call.1} parent=1 // pred_region
      %1455 = dma.done [#allocation3], 128
    $region89: #{tpu_custom_call.1} parent=1 // pred_fallthru
      _
    %1456 = vsyncpa [#allocation3], 1

</llo_original>
